<compile_context>
chip_gen: v7x
topology: tpu7x:2x2x1
jax: 0.10.0
libtpu: 0.0.40
codegen_flags: <defaults>
</compile_context>

<pallas_src>
import numpy as np
import jax
import jax.numpy as jnp
from jax.experimental import pallas as pl
from jax.experimental.pallas import tpu as pltpu

L_IN = 150          # sequence length (implied by the hard-coded 50*20 in fc1)
C_IN = 6            # IMU channels
C1 = 30             # conv1 out channels
C2 = 20             # conv2 out channels
L_OUT2 = 50         # conv2 output length (stride 3)
HID = 100
NUM_CLASSES = 4
K = 3               # conv kernel size

G = 5               # conv2 output positions packed per row ("wide" layout)
NG = L_OUT2 // G    # row groups per sample (10)
XC_LANES = G * K * K * C_IN   # 270 : (iw, conv1-tap, input-tap, channel)
H1_LANES = G * K * C1         # 450 : (iw, conv1-tap, conv1-channel)
H2_LANES = G * C2             # 100 : (iw, conv2-channel)


# ----------------------------------------------------------------------------
# Fused kernel: one grid step = one tile of `tb` samples (batch on sublanes).
# Row index inside a tile = ig*tb + b  (ig = conv2-position group, b = sample).
# ----------------------------------------------------------------------------
def _make_kernel(tb):
    def kernel(xc_ref, w1_ref, b1_ref, w2_ref, b2_ref, vg_ref,
               fc1b_ref, fc2w_ref, fc2b_ref, o_ref):
        # conv1 (k=3, s=1, p=1) + ReLU: all 3 taps of the G=5 packed output
        # positions in one bf16 matmul against a small block-diagonal weight.
        h1 = jnp.dot(xc_ref[...], w1_ref[...],
                     preferred_element_type=jnp.float32)             # (NG*tb, 450)
        h1 = jnp.maximum(h1 + b1_ref[...], 0.0)

        # conv2's left zero-pad is conv1 "position -1": it lives only in lanes
        # [0, C1) of the first tb rows (ig=0, iw=0, tap 0).  Force it to zero.
        row = jax.lax.broadcasted_iota(jnp.int32, h1.shape, 0)
        lane = jax.lax.broadcasted_iota(jnp.int32, h1.shape, 1)
        h1 = jnp.where((row < tb) & (lane < C1), 0.0, h1)

        # conv2 (k=3, s=3, p=1) + ReLU: the strided gather is already in the
        # layout, so this is one matmul against kron(I_G, W2).
        h2 = jnp.dot(h1.astype(jnp.bfloat16), w2_ref[...],
                     preferred_element_type=jnp.float32)             # (NG*tb, 100)
        h2 = jnp.maximum(h2 + b2_ref[...], 0.0).astype(jnp.bfloat16)

        # flatten (torch x.view(B,-1)) + fc1: the channel-major flatten order is
        # folded into the host-permuted weight groups vg; NG accumulated matmuls
        # over static row slices of h2 (each slice = one position group, all b).
        z1 = jnp.dot(h2[0:tb, :], vg_ref[0],
                     preferred_element_type=jnp.float32)             # (tb, 100)
        for ig in range(1, NG):
            z1 = z1 + jnp.dot(h2[ig * tb:(ig + 1) * tb, :], vg_ref[ig],
                              preferred_element_type=jnp.float32)

        # TODO(synk): nn.Dropout(0.3) training-mode masking not reproduced
        #             (inference-mode identity only).
        a1 = 1.0 / (1.0 + jnp.exp(-(z1 + fc1b_ref[...])))            # sigmoid

        z2 = jnp.dot(a1, fc2w_ref[...],
                     preferred_element_type=jnp.float32) + fc2b_ref[...]   # (tb, 4)

        m = jnp.max(z2, axis=1, keepdims=True)
        e = jnp.exp(z2 - m)
        s = jnp.sum(e, axis=1, keepdims=True)
        o_ref[...] = e * pl.reciprocal(s, approx=False)              # softmax(dim=1)

    return kernel


# ----------------------------------------------------------------------------
# Parameter preparation (host-side, done once): torch layout -> kernel layout.
# All weights are tb-independent and tiny (<0.6 MB total in bf16).
# ----------------------------------------------------------------------------
def build_kernel_params(p):
    w1_t = np.asarray(p["w1_t"], np.float32)     # (30, 6, 3)  Conv1d (O, I, K)
    b1 = np.asarray(p["b1"], np.float32)
    w2_t = np.asarray(p["w2_t"], np.float32)     # (20, 30, 3)
    b2 = np.asarray(p["b2"], np.float32)
    fc1_t = np.asarray(p["fc1_t"], np.float32)   # (100, 1000)
    fc1b = np.asarray(p["fc1b"], np.float32)
    fc2_t = np.asarray(p["fc2_t"], np.float32)   # (4, 100)
    fc2b = np.asarray(p["fc2b"], np.float32)

    # conv1: taps stacked -> (18, 30); block-diag over the G*K packed positions.
    w1s = np.transpose(w1_t, (2, 1, 0)).reshape(K * C_IN, C1)              # (18, 30)
    w1g = np.kron(np.eye(G * K, dtype=np.float32), w1s)                    # (270, 450)
    b1g = np.tile(b1, G * K)[None, :]                                      # (1, 450)

    # conv2: (tap, in-ch) stacked -> (90, 20); block-diag over the G positions.
    w2r = np.transpose(w2_t, (2, 1, 0)).reshape(K * C1, C2)                # (90, 20)
    w2g = np.kron(np.eye(G, dtype=np.float32), w2r)                        # (450, 100)
    b2g = np.tile(b2, G)[None, :]                                          # (1, 100)

    # fc1 columns regrouped so that row (iw*20 + c) of group ig multiplies the
    # h2 lane holding channel c at conv2 position i = ig*G + iw  (torch order
    # of x.view(B,-1) is c*50 + i).
    vg = fc1_t.reshape(HID, C2, NG, G)                                     # [h, c, ig, iw]
    vg = np.transpose(vg, (2, 3, 1, 0)).reshape(NG, G * C2, HID)           # (10, 100, 100)

    return {
        "w1g": jnp.asarray(w1g, jnp.bfloat16),
        "b1g": jnp.asarray(b1g, jnp.float32),
        "w2g": jnp.asarray(w2g, jnp.bfloat16),
        "b2g": jnp.asarray(b2g, jnp.float32),
        "vg": jnp.asarray(vg, jnp.bfloat16),
        "fc1b": jnp.asarray(fc1b[None, :], jnp.float32),
        "fc2wt": jnp.asarray(fc2_t.T, jnp.float32),                        # (100, 4)
        "fc2b": jnp.asarray(fc2b[None, :], jnp.float32),
    }


# ----------------------------------------------------------------------------
# Full forward: light XLA glue (zero-pad + wide im2col + batch tiling), then the
# single fused Pallas kernel.  No epilogue beyond slicing off batch padding.
# For real workloads raise tb (multiple of 8, e.g. 64-256): the grid axis is
# "parallel", so >=2 tiles also engages both v7x TensorCores.
# ----------------------------------------------------------------------------
def make_forward(tb):
    assert tb % 8 == 0

    @jax.jit
    def forward(x, kp):
        B = x.shape[0]
        T = -(-B // tb)
        b_pad = T * tb
        if b_pad != B:
            x = jnp.pad(x, ((0, b_pad - B), (0, 0), (0, 0)))
        xpf = jnp.pad(x, ((0, 0), (2, 0), (0, 0)))                   # (b_pad, 152, 6)

        # Raw position read for (conv2-out i, conv1 tap t, input tap k) is
        # 3i + t + k - 2; the two leading zero rows of xpf absorb the negatives.
        pos = (3 * np.arange(L_OUT2)[:, None, None]
               + np.arange(K)[None, :, None]
               + np.arange(K)[None, None, :]).reshape(-1)            # (450,)
        cols = jnp.take(xpf, jnp.asarray(pos, np.int32), axis=1)     # (b_pad, 450, 6)
        cols = cols.reshape(b_pad, L_OUT2, K, K, C_IN)               # (b, i, t, k, ch)
        cols = cols.reshape(T, tb, NG, G, K * K * C_IN)              # i -> (ig, iw)
        xc = jnp.transpose(cols, (0, 2, 1, 3, 4))                    # (T, NG, tb, G, 54)
        xc = xc.reshape(T * NG * tb, XC_LANES).astype(jnp.bfloat16)

        out = pl.pallas_call(
            _make_kernel(tb),
            out_shape=jax.ShapeDtypeStruct((b_pad, NUM_CLASSES), jnp.float32),
            grid=(T,),
            in_specs=[
                pl.BlockSpec((NG * tb, XC_LANES), lambda t: (t, 0)),     # im2col tile
                pl.BlockSpec((XC_LANES, H1_LANES), lambda t: (0, 0)),    # conv1 weight
                pl.BlockSpec((1, H1_LANES), lambda t: (0, 0)),           # conv1 bias
                pl.BlockSpec((H1_LANES, H2_LANES), lambda t: (0, 0)),    # conv2 weight
                pl.BlockSpec((1, H2_LANES), lambda t: (0, 0)),           # conv2 bias
                pl.BlockSpec((NG, H2_LANES, HID), lambda t: (0, 0, 0)),  # fc1 weight groups
                pl.BlockSpec((1, HID), lambda t: (0, 0)),                # fc1 bias
                pl.BlockSpec((HID, NUM_CLASSES), lambda t: (0, 0)),      # fc2 weight
                pl.BlockSpec((1, NUM_CLASSES), lambda t: (0, 0)),        # fc2 bias
            ],
            out_specs=pl.BlockSpec((tb, NUM_CLASSES), lambda t: (t, 0)),
            compiler_params=pltpu.CompilerParams(
                dimension_semantics=("parallel",)),
        )(xc, kp["w1g"], kp["b1g"], kp["w2g"], kp["b2g"], kp["vg"],
          kp["fc1b"], kp["fc2wt"], kp["fc2b"])

        return out[:B]

    return forward


# Pure-JAX reference mirroring the torch module (sanity check).
def reference_forward(x, p):
    xt = jnp.transpose(x, (0, 2, 1))                                 # (B, C_IN, L)
    h1 = jax.lax.conv_general_dilated(
        xt, p["w1_t"], window_strides=(1,), padding=[(1, 1)],
        dimension_numbers=("NCH", "OIH", "NCH"))
    h1 = jax.nn.relu(h1 + p["b1"].reshape(1, C1, 1))
    h2 = jax.lax.conv_general_dilated(
        h1, p["w2_t"], window_strides=(3,), padding=[(1, 1)],
        dimension_numbers=("NCH", "OIH", "NCH"))
    h2 = jax.nn.relu(h2 + p["b2"].reshape(1, C2, 1))
    flat = h2.reshape(x.shape[0], -1)
    z1 = jax.nn.sigmoid(flat @ p["fc1_t"].T + p["fc1b"])
    z2 = z1 @ p["fc2_t"].T + p["fc2b"]
    return jax.nn.softmax(z2, axis=1)


if __name__ == "__main__":
    key = jax.random.PRNGKey(0)
    ks = jax.random.split(key, 9)

    def unif(k, shape, fan_in):
        bnd = 1.0 / np.sqrt(fan_in)
        return jax.random.uniform(k, shape, jnp.float32, -bnd, bnd)

    # torch-layout parameters (deterministic, PyTorch-style uniform init)
    w1_t = unif(ks[0], (C1, C_IN, K), C_IN * K)
    b1 = unif(ks[1], (C1,), C_IN * K)
    w2_t = unif(ks[2], (C2, C1, K), C1 * K)
    b2 = unif(ks[3], (C2,), C1 * K)
    fc1_t = unif(ks[4], (HID, C2 * L_OUT2), C2 * L_OUT2)
    fc1b = unif(ks[5], (HID,), C2 * L_OUT2)
    fc2_t = unif(ks[6], (NUM_CLASSES, HID), HID)
    fc2b = unif(ks[7], (NUM_CLASSES,), HID)

    torch_params = {"w1_t": w1_t, "b1": b1, "w2_t": w2_t, "b2": b2,
                    "fc1_t": fc1_t, "fc1b": fc1b, "fc2_t": fc2_t, "fc2b": fc2b}

    x = jax.random.normal(ks[8], (2, L_IN, C_IN), jnp.float32)       # (B, L, C)

    B = x.shape[0]
    tb = 8                                   # batch tile (min sensible; raise for throughput)
    kp = build_kernel_params(torch_params)
    forward = make_forward(tb)

    out = jax.block_until_ready(forward(x, kp))
    ref = jax.block_until_ready(reference_forward(x, torch_params))

    assert out.shape == (B, NUM_CLASSES), out.shape
    # bf16 matmuls with f32 accumulation vs f32 reference.
    assert np.allclose(np.asarray(out), np.asarray(ref), atol=2e-2), (out, ref)
    assert np.allclose(np.asarray(out).sum(axis=1), 1.0, atol=1e-4)

    print("KERNEL_OK")
</pallas_src>

<mosaic_0001>
module attributes {stable_mosaic.version = 11 : i64} {
  func.func @kernel(%arg0: i32, %arg1: memref<80x270xbf16, #tpu.memory_space<vmem>>, %arg2: memref<270x450xbf16, #tpu.memory_space<vmem>>, %arg3: memref<1x450xf32, #tpu.memory_space<vmem>>, %arg4: memref<450x100xbf16, #tpu.memory_space<vmem>>, %arg5: memref<1x100xf32, #tpu.memory_space<vmem>>, %arg6: memref<10x100x100xbf16, #tpu.memory_space<vmem>>, %arg7: memref<1x100xf32, #tpu.memory_space<vmem>>, %arg8: memref<100x4xf32, #tpu.memory_space<vmem>>, %arg9: memref<1x4xf32, #tpu.memory_space<vmem>>, %arg10: memref<8x4xf32, #tpu.memory_space<vmem>>) attributes {dimension_semantics = [#tpu.dimension_semantics<parallel>], iteration_bounds = array<i64: 1>, scalar_prefetch = 0 : i64, scratch_operands = 0 : i64, tpu.core_type = #tpu.core_type<tc>, window_params = [{transform_indices = @transform_0, window_bounds = array<i64: 80, 270>}, {pipeline_mode = #tpu.pipeline_mode<synchronous>, transform_indices = @transform_1, window_bounds = array<i64: 270, 450>}, {pipeline_mode = #tpu.pipeline_mode<synchronous>, transform_indices = @transform_2, window_bounds = array<i64: 1, 450>}, {pipeline_mode = #tpu.pipeline_mode<synchronous>, transform_indices = @transform_3, window_bounds = array<i64: 450, 100>}, {pipeline_mode = #tpu.pipeline_mode<synchronous>, transform_indices = @transform_4, window_bounds = array<i64: 1, 100>}, {pipeline_mode = #tpu.pipeline_mode<synchronous>, transform_indices = @transform_5, window_bounds = array<i64: 10, 100, 100>}, {pipeline_mode = #tpu.pipeline_mode<synchronous>, transform_indices = @transform_6, window_bounds = array<i64: 1, 100>}, {pipeline_mode = #tpu.pipeline_mode<synchronous>, transform_indices = @transform_7, window_bounds = array<i64: 100, 4>}, {pipeline_mode = #tpu.pipeline_mode<synchronous>, transform_indices = @transform_8, window_bounds = array<i64: 1, 4>}, {transform_indices = @transform_9, window_bounds = array<i64: 8, 4>}]} {
    %c0 = arith.constant 0 : index
    %c0_0 = arith.constant 0 : index
    %0 = vector.load %arg1[%c0, %c0_0] : memref<80x270xbf16, #tpu.memory_space<vmem>>, vector<80x270xbf16>
    %c0_1 = arith.constant 0 : index
    %c0_2 = arith.constant 0 : index
    %1 = vector.load %arg2[%c0_1, %c0_2] : memref<270x450xbf16, #tpu.memory_space<vmem>>, vector<270x450xbf16>
    %cst = arith.constant dense<0.000000e+00> : vector<80x450xf32>
    %2 = tpu.matmul %0, %1, %cst {dimension_numbers = #tpu.dot_dimension_numbers<[1], [0], [0], [1], [0, 0, 1, 1], [], []>} : vector<80x270xbf16>, vector<270x450xbf16>, vector<80x450xf32> -> vector<80x450xf32>
    %c0_3 = arith.constant 0 : index
    %c0_4 = arith.constant 0 : index
    %3 = vector.load %arg3[%c0_3, %c0_4] : memref<1x450xf32, #tpu.memory_space<vmem>>, vector<1x450xf32>
    %4 = vector.broadcast %3 : vector<1x450xf32> to vector<80x450xf32>
    %5 = arith.addf %2, %4 : vector<80x450xf32>
    %cst_5 = arith.constant 0.000000e+00 : f32
    %6 = vector.broadcast %cst_5 : f32 to vector<80x450xf32>
    %7 = arith.maximumf %5, %6 : vector<80x450xf32>
    %8 = tpu.iota {dimensions = array<i32: 0>} : vector<80x450xi32>
    %9 = tpu.iota {dimensions = array<i32: 1>} : vector<80x450xi32>
    %c8_i32 = arith.constant 8 : i32
    %10 = vector.broadcast %c8_i32 : i32 to vector<80x450xi32>
    %11 = arith.cmpi slt, %8, %10 : vector<80x450xi32>
    %c30_i32 = arith.constant 30 : i32
    %12 = vector.broadcast %c30_i32 : i32 to vector<80x450xi32>
    %13 = arith.cmpi slt, %9, %12 : vector<80x450xi32>
    %14 = arith.andi %11, %13 : vector<80x450xi1>
    %cst_6 = arith.constant 0.000000e+00 : f32
    %15 = vector.broadcast %cst_6 : f32 to vector<80x450xf32>
    %16 = arith.select %14, %15, %7 : vector<80x450xi1>, vector<80x450xf32>
    %17 = arith.truncf %16 : vector<80x450xf32> to vector<80x450xbf16>
    %c0_7 = arith.constant 0 : index
    %c0_8 = arith.constant 0 : index
    %18 = vector.load %arg4[%c0_7, %c0_8] : memref<450x100xbf16, #tpu.memory_space<vmem>>, vector<450x100xbf16>
    %cst_9 = arith.constant dense<0.000000e+00> : vector<80x100xf32>
    %19 = tpu.matmul %17, %18, %cst_9 {dimension_numbers = #tpu.dot_dimension_numbers<[1], [0], [0], [1], [0, 0, 1, 1], [], []>} : vector<80x450xbf16>, vector<450x100xbf16>, vector<80x100xf32> -> vector<80x100xf32>
    %c0_10 = arith.constant 0 : index
    %c0_11 = arith.constant 0 : index
    %20 = vector.load %arg5[%c0_10, %c0_11] : memref<1x100xf32, #tpu.memory_space<vmem>>, vector<1x100xf32>
    %21 = vector.broadcast %20 : vector<1x100xf32> to vector<80x100xf32>
    %22 = arith.addf %19, %21 : vector<80x100xf32>
    %cst_12 = arith.constant 0.000000e+00 : f32
    %23 = vector.broadcast %cst_12 : f32 to vector<80x100xf32>
    %24 = arith.maximumf %22, %23 : vector<80x100xf32>
    %25 = arith.truncf %24 : vector<80x100xf32> to vector<80x100xbf16>
    %26 = vector.extract_strided_slice %25 {offsets = [0, 0], sizes = [8, 100], strides = [1, 1]} : vector<80x100xbf16> to vector<8x100xbf16>
    %c0_13 = arith.constant 0 : index
    %c0_14 = arith.constant 0 : index
    %c0_15 = arith.constant 0 : index
    %27 = vector.load %arg6[%c0_13, %c0_14, %c0_15] : memref<10x100x100xbf16, #tpu.memory_space<vmem>>, vector<1x100x100xbf16>
    %28 = vector.shape_cast %27 : vector<1x100x100xbf16> to vector<100x100xbf16>
    %cst_16 = arith.constant dense<0.000000e+00> : vector<8x100xf32>
    %29 = tpu.matmul %26, %28, %cst_16 {dimension_numbers = #tpu.dot_dimension_numbers<[1], [0], [0], [1], [0, 0, 1, 1], [], []>} : vector<8x100xbf16>, vector<100x100xbf16>, vector<8x100xf32> -> vector<8x100xf32>
    %30 = vector.extract_strided_slice %25 {offsets = [8, 0], sizes = [8, 100], strides = [1, 1]} : vector<80x100xbf16> to vector<8x100xbf16>
    %c1 = arith.constant 1 : index
    %c0_17 = arith.constant 0 : index
    %c0_18 = arith.constant 0 : index
    %31 = vector.load %arg6[%c1, %c0_17, %c0_18] : memref<10x100x100xbf16, #tpu.memory_space<vmem>>, vector<1x100x100xbf16>
    %32 = vector.shape_cast %31 : vector<1x100x100xbf16> to vector<100x100xbf16>
    %cst_19 = arith.constant dense<0.000000e+00> : vector<8x100xf32>
    %33 = tpu.matmul %30, %32, %cst_19 {dimension_numbers = #tpu.dot_dimension_numbers<[1], [0], [0], [1], [0, 0, 1, 1], [], []>} : vector<8x100xbf16>, vector<100x100xbf16>, vector<8x100xf32> -> vector<8x100xf32>
    %34 = arith.addf %29, %33 : vector<8x100xf32>
    %35 = vector.extract_strided_slice %25 {offsets = [16, 0], sizes = [8, 100], strides = [1, 1]} : vector<80x100xbf16> to vector<8x100xbf16>
    %c2 = arith.constant 2 : index
    %c0_20 = arith.constant 0 : index
    %c0_21 = arith.constant 0 : index
    %36 = vector.load %arg6[%c2, %c0_20, %c0_21] : memref<10x100x100xbf16, #tpu.memory_space<vmem>>, vector<1x100x100xbf16>
    %37 = vector.shape_cast %36 : vector<1x100x100xbf16> to vector<100x100xbf16>
    %cst_22 = arith.constant dense<0.000000e+00> : vector<8x100xf32>
    %38 = tpu.matmul %35, %37, %cst_22 {dimension_numbers = #tpu.dot_dimension_numbers<[1], [0], [0], [1], [0, 0, 1, 1], [], []>} : vector<8x100xbf16>, vector<100x100xbf16>, vector<8x100xf32> -> vector<8x100xf32>
    %39 = arith.addf %34, %38 : vector<8x100xf32>
    %40 = vector.extract_strided_slice %25 {offsets = [24, 0], sizes = [8, 100], strides = [1, 1]} : vector<80x100xbf16> to vector<8x100xbf16>
    %c3 = arith.constant 3 : index
    %c0_23 = arith.constant 0 : index
    %c0_24 = arith.constant 0 : index
    %41 = vector.load %arg6[%c3, %c0_23, %c0_24] : memref<10x100x100xbf16, #tpu.memory_space<vmem>>, vector<1x100x100xbf16>
    %42 = vector.shape_cast %41 : vector<1x100x100xbf16> to vector<100x100xbf16>
    %cst_25 = arith.constant dense<0.000000e+00> : vector<8x100xf32>
    %43 = tpu.matmul %40, %42, %cst_25 {dimension_numbers = #tpu.dot_dimension_numbers<[1], [0], [0], [1], [0, 0, 1, 1], [], []>} : vector<8x100xbf16>, vector<100x100xbf16>, vector<8x100xf32> -> vector<8x100xf32>
    %44 = arith.addf %39, %43 : vector<8x100xf32>
    %45 = vector.extract_strided_slice %25 {offsets = [32, 0], sizes = [8, 100], strides = [1, 1]} : vector<80x100xbf16> to vector<8x100xbf16>
    %c4 = arith.constant 4 : index
    %c0_26 = arith.constant 0 : index
    %c0_27 = arith.constant 0 : index
    %46 = vector.load %arg6[%c4, %c0_26, %c0_27] : memref<10x100x100xbf16, #tpu.memory_space<vmem>>, vector<1x100x100xbf16>
    %47 = vector.shape_cast %46 : vector<1x100x100xbf16> to vector<100x100xbf16>
    %cst_28 = arith.constant dense<0.000000e+00> : vector<8x100xf32>
    %48 = tpu.matmul %45, %47, %cst_28 {dimension_numbers = #tpu.dot_dimension_numbers<[1], [0], [0], [1], [0, 0, 1, 1], [], []>} : vector<8x100xbf16>, vector<100x100xbf16>, vector<8x100xf32> -> vector<8x100xf32>
    %49 = arith.addf %44, %48 : vector<8x100xf32>
    %50 = vector.extract_strided_slice %25 {offsets = [40, 0], sizes = [8, 100], strides = [1, 1]} : vector<80x100xbf16> to vector<8x100xbf16>
    %c5 = arith.constant 5 : index
    %c0_29 = arith.constant 0 : index
    %c0_30 = arith.constant 0 : index
    %51 = vector.load %arg6[%c5, %c0_29, %c0_30] : memref<10x100x100xbf16, #tpu.memory_space<vmem>>, vector<1x100x100xbf16>
    %52 = vector.shape_cast %51 : vector<1x100x100xbf16> to vector<100x100xbf16>
    %cst_31 = arith.constant dense<0.000000e+00> : vector<8x100xf32>
    %53 = tpu.matmul %50, %52, %cst_31 {dimension_numbers = #tpu.dot_dimension_numbers<[1], [0], [0], [1], [0, 0, 1, 1], [], []>} : vector<8x100xbf16>, vector<100x100xbf16>, vector<8x100xf32> -> vector<8x100xf32>
    %54 = arith.addf %49, %53 : vector<8x100xf32>
    %55 = vector.extract_strided_slice %25 {offsets = [48, 0], sizes = [8, 100], strides = [1, 1]} : vector<80x100xbf16> to vector<8x100xbf16>
    %c6 = arith.constant 6 : index
    %c0_32 = arith.constant 0 : index
    %c0_33 = arith.constant 0 : index
    %56 = vector.load %arg6[%c6, %c0_32, %c0_33] : memref<10x100x100xbf16, #tpu.memory_space<vmem>>, vector<1x100x100xbf16>
    %57 = vector.shape_cast %56 : vector<1x100x100xbf16> to vector<100x100xbf16>
    %cst_34 = arith.constant dense<0.000000e+00> : vector<8x100xf32>
    %58 = tpu.matmul %55, %57, %cst_34 {dimension_numbers = #tpu.dot_dimension_numbers<[1], [0], [0], [1], [0, 0, 1, 1], [], []>} : vector<8x100xbf16>, vector<100x100xbf16>, vector<8x100xf32> -> vector<8x100xf32>
    %59 = arith.addf %54, %58 : vector<8x100xf32>
    %60 = vector.extract_strided_slice %25 {offsets = [56, 0], sizes = [8, 100], strides = [1, 1]} : vector<80x100xbf16> to vector<8x100xbf16>
    %c7 = arith.constant 7 : index
    %c0_35 = arith.constant 0 : index
    %c0_36 = arith.constant 0 : index
    %61 = vector.load %arg6[%c7, %c0_35, %c0_36] : memref<10x100x100xbf16, #tpu.memory_space<vmem>>, vector<1x100x100xbf16>
    %62 = vector.shape_cast %61 : vector<1x100x100xbf16> to vector<100x100xbf16>
    %cst_37 = arith.constant dense<0.000000e+00> : vector<8x100xf32>
    %63 = tpu.matmul %60, %62, %cst_37 {dimension_numbers = #tpu.dot_dimension_numbers<[1], [0], [0], [1], [0, 0, 1, 1], [], []>} : vector<8x100xbf16>, vector<100x100xbf16>, vector<8x100xf32> -> vector<8x100xf32>
    %64 = arith.addf %59, %63 : vector<8x100xf32>
    %65 = vector.extract_strided_slice %25 {offsets = [64, 0], sizes = [8, 100], strides = [1, 1]} : vector<80x100xbf16> to vector<8x100xbf16>
    %c8 = arith.constant 8 : index
    %c0_38 = arith.constant 0 : index
    %c0_39 = arith.constant 0 : index
    %66 = vector.load %arg6[%c8, %c0_38, %c0_39] : memref<10x100x100xbf16, #tpu.memory_space<vmem>>, vector<1x100x100xbf16>
    %67 = vector.shape_cast %66 : vector<1x100x100xbf16> to vector<100x100xbf16>
    %cst_40 = arith.constant dense<0.000000e+00> : vector<8x100xf32>
    %68 = tpu.matmul %65, %67, %cst_40 {dimension_numbers = #tpu.dot_dimension_numbers<[1], [0], [0], [1], [0, 0, 1, 1], [], []>} : vector<8x100xbf16>, vector<100x100xbf16>, vector<8x100xf32> -> vector<8x100xf32>
    %69 = arith.addf %64, %68 : vector<8x100xf32>
    %70 = vector.extract_strided_slice %25 {offsets = [72, 0], sizes = [8, 100], strides = [1, 1]} : vector<80x100xbf16> to vector<8x100xbf16>
    %c9 = arith.constant 9 : index
    %c0_41 = arith.constant 0 : index
    %c0_42 = arith.constant 0 : index
    %71 = vector.load %arg6[%c9, %c0_41, %c0_42] : memref<10x100x100xbf16, #tpu.memory_space<vmem>>, vector<1x100x100xbf16>
    %72 = vector.shape_cast %71 : vector<1x100x100xbf16> to vector<100x100xbf16>
    %cst_43 = arith.constant dense<0.000000e+00> : vector<8x100xf32>
    %73 = tpu.matmul %70, %72, %cst_43 {dimension_numbers = #tpu.dot_dimension_numbers<[1], [0], [0], [1], [0, 0, 1, 1], [], []>} : vector<8x100xbf16>, vector<100x100xbf16>, vector<8x100xf32> -> vector<8x100xf32>
    %74 = arith.addf %69, %73 : vector<8x100xf32>
    %c0_44 = arith.constant 0 : index
    %c0_45 = arith.constant 0 : index
    %75 = vector.load %arg7[%c0_44, %c0_45] : memref<1x100xf32, #tpu.memory_space<vmem>>, vector<1x100xf32>
    %76 = vector.broadcast %75 : vector<1x100xf32> to vector<8x100xf32>
    %77 = arith.addf %74, %76 : vector<8x100xf32>
    %cst_46 = arith.constant 0.000000e+00 : f32
    %78 = vector.broadcast %cst_46 : f32 to vector<8x100xf32>
    %79 = arith.subf %78, %77 : vector<8x100xf32>
    %80 = math.exp %79 : vector<8x100xf32>
    %cst_47 = arith.constant 1.000000e+00 : f32
    %81 = vector.broadcast %cst_47 : f32 to vector<8x100xf32>
    %82 = arith.addf %81, %80 : vector<8x100xf32>
    %cst_48 = arith.constant 1.000000e+00 : f32
    %83 = vector.broadcast %cst_48 : f32 to vector<8x100xf32>
    %84 = arith.divf %83, %82 : vector<8x100xf32>
    %c0_49 = arith.constant 0 : index
    %c0_50 = arith.constant 0 : index
    %85 = vector.load %arg8[%c0_49, %c0_50] : memref<100x4xf32, #tpu.memory_space<vmem>>, vector<100x4xf32>
    %cst_51 = arith.constant dense<0.000000e+00> : vector<8x4xf32>
    %86 = tpu.matmul %84, %85, %cst_51 {dimension_numbers = #tpu.dot_dimension_numbers<[1], [0], [0], [1], [0, 0, 1, 1], [], []>} : vector<8x100xf32>, vector<100x4xf32>, vector<8x4xf32> -> vector<8x4xf32>
    %c0_52 = arith.constant 0 : index
    %c0_53 = arith.constant 0 : index
    %87 = vector.load %arg9[%c0_52, %c0_53] : memref<1x4xf32, #tpu.memory_space<vmem>>, vector<1x4xf32>
    %88 = vector.broadcast %87 : vector<1x4xf32> to vector<8x4xf32>
    %89 = arith.addf %86, %88 : vector<8x4xf32>
    %cst_54 = arith.constant dense<0xFF800000> : vector<8xf32>
    %90 = vector.multi_reduction <maximumf>, %89, %cst_54 [1] : vector<8x4xf32> to vector<8xf32>
    %91 = vector.shape_cast %90 : vector<8xf32> to vector<8x1xf32>
    %92 = vector.broadcast %91 : vector<8x1xf32> to vector<8x4xf32>
    %93 = arith.subf %89, %92 : vector<8x4xf32>
    %94 = math.exp %93 : vector<8x4xf32>
    %cst_55 = arith.constant dense<0.000000e+00> : vector<8xf32>
    %95 = vector.multi_reduction <add>, %94, %cst_55 [1] : vector<8x4xf32> to vector<8xf32>
    %96 = vector.shape_cast %95 : vector<8xf32> to vector<8x1xf32>
    %97 = tpu.reciprocal %96 : vector<8x1xf32> -> vector<8x1xf32>
    %98 = vector.broadcast %97 : vector<8x1xf32> to vector<8x4xf32>
    %99 = arith.mulf %94, %98 : vector<8x4xf32>
    %c0_56 = arith.constant 0 : index
    %c0_57 = arith.constant 0 : index
    %100 = vector.load %arg10[%c0_56, %c0_57] : memref<8x4xf32, #tpu.memory_space<vmem>>, vector<8x4xf32>
    tpu.vector_store %arg10[%c0_56, %c0_57], %99 {strides = array<i32>} : memref<8x4xf32, #tpu.memory_space<vmem>>, vector<8x4xf32>,
    return
  }
  func.func @transform_0(%arg0: i32) -> (i32, i32) {
    %c0_i32 = arith.constant 0 : i32
    %c0_i32_0 = arith.constant 0 : i32
    return %arg0, %c0_i32 : i32, i32
  }
  func.func @transform_1(%arg0: i32) -> (i32, i32) {
    %c0_i32 = arith.constant 0 : i32
    %c0_i32_0 = arith.constant 0 : i32
    %c0_i32_1 = arith.constant 0 : i32
    return %c0_i32, %c0_i32_0 : i32, i32
  }
  func.func @transform_2(%arg0: i32) -> (i32, i32) {
    %c0_i32 = arith.constant 0 : i32
    %c0_i32_0 = arith.constant 0 : i32
    %c0_i32_1 = arith.constant 0 : i32
    return %c0_i32, %c0_i32_0 : i32, i32
  }
  func.func @transform_3(%arg0: i32) -> (i32, i32) {
    %c0_i32 = arith.constant 0 : i32
    %c0_i32_0 = arith.constant 0 : i32
    %c0_i32_1 = arith.constant 0 : i32
    return %c0_i32, %c0_i32_0 : i32, i32
  }
  func.func @transform_4(%arg0: i32) -> (i32, i32) {
    %c0_i32 = arith.constant 0 : i32
    %c0_i32_0 = arith.constant 0 : i32
    %c0_i32_1 = arith.constant 0 : i32
    return %c0_i32, %c0_i32_0 : i32, i32
  }
  func.func @transform_5(%arg0: i32) -> (i32, i32, i32) {
    %c0_i32 = arith.constant 0 : i32
    %c0_i32_0 = arith.constant 0 : i32
    %c0_i32_1 = arith.constant 0 : i32
    %c0_i32_2 = arith.constant 0 : i32
    return %c0_i32, %c0_i32_0, %c0_i32_1 : i32, i32, i32
  }
  func.func @transform_6(%arg0: i32) -> (i32, i32) {
    %c0_i32 = arith.constant 0 : i32
    %c0_i32_0 = arith.constant 0 : i32
    %c0_i32_1 = arith.constant 0 : i32
    return %c0_i32, %c0_i32_0 : i32, i32
  }
  func.func @transform_7(%arg0: i32) -> (i32, i32) {
    %c0_i32 = arith.constant 0 : i32
    %c0_i32_0 = arith.constant 0 : i32
    %c0_i32_1 = arith.constant 0 : i32
    return %c0_i32, %c0_i32_0 : i32, i32
  }
  func.func @transform_8(%arg0: i32) -> (i32, i32) {
    %c0_i32 = arith.constant 0 : i32
    %c0_i32_0 = arith.constant 0 : i32
    %c0_i32_1 = arith.constant 0 : i32
    return %c0_i32, %c0_i32_0 : i32, i32
  }
  func.func @transform_9(%arg0: i32) -> (i32, i32) {
    %c0_i32 = arith.constant 0 : i32
    %c0_i32_0 = arith.constant 0 : i32
    return %arg0, %c0_i32 : i32, i32
  }
}

</mosaic_0001>

<llo_original>
// kernel: forward.1
$region0: #{forward.1}
  #allocation0 [shape = 'u32[]', space=smem, size = 0x4, offset = 0x4, fixed_abs, tag = 'smem constant byte address 0x4 - core index']
  #allocation1 [shape = 'u32[144,128]{1,0:T(1,128)}', space=vmem, size = 0x12000, scoped, tag = 'internal scratch']
  %s0 = inlined_call_operand.vmem [shape: bf16[80,270], index: 0, kind: input, shape index: {}]
  %s1 = inlined_call_operand.vmem [shape: bf16[270,450], index: 1, kind: input, shape index: {}]
  %s2 = inlined_call_operand.vmem [shape: f32[1,450], index: 2, kind: input, shape index: {}]
  %s3 = inlined_call_operand.vmem [shape: bf16[450,100], index: 3, kind: input, shape index: {}]
  %s4 = inlined_call_operand.vmem [shape: f32[1,100], index: 4, kind: input, shape index: {}]
  %s5 = inlined_call_operand.vmem [shape: bf16[10,100,100], index: 5, kind: input, shape index: {}]
  %s6 = inlined_call_operand.vmem [shape: f32[1,100], index: 6, kind: input, shape index: {}]
  %s7 = inlined_call_operand.vmem [shape: f32[100,4], index: 7, kind: input, shape index: {}]
  %s8 = inlined_call_operand.vmem [shape: f32[1,4], index: 8, kind: input, shape index: {}]
  %s9 = inlined_call_operand.vmem [shape: f32[8,4], index: 9, kind: output, shape index: {}]
  %s10 = sld [smem:[#allocation0]]
  $region46: #{forward.1} parent=0
    _
  %s12 = ssub.s32 1, %s10
  %s13 = scalar_select 0, %s12, %s10
  // Predicated region
  $region2: #{forward.1} parent=0 // pred_check
    _
  $region3: #{forward.1} parent=0 // pred_check_branch
    %15 = sbr.rel (0) target = $region5
  $region4: #{forward.1} parent=0 // pred_region
    _
  $region5: #{forward.1} parent=0 // pred_fallthru
    _
  // Predicated region
  $region6: #{forward.1} parent=0 // pred_check
    _
  $region7: #{forward.1} parent=0 // pred_check_branch
    %17 = sbr.rel (0) target = $region9
  $region8: #{forward.1} parent=0 // pred_region
    _
  $region9: #{forward.1} parent=0 // pred_fallthru
    _
  // Predicated region
  $region10: #{forward.1} parent=0 // pred_check
    _
  $region11: #{forward.1} parent=0 // pred_check_branch
    %19 = sbr.rel (0) target = $region13
  $region12: #{forward.1} parent=0 // pred_region
    _
  $region13: #{forward.1} parent=0 // pred_fallthru
    _
  // Predicated region
  $region14: #{forward.1} parent=0 // pred_check
    _
  $region15: #{forward.1} parent=0 // pred_check_branch
    %21 = sbr.rel (0) target = $region17
  $region16: #{forward.1} parent=0 // pred_region
    _
  $region17: #{forward.1} parent=0 // pred_fallthru
    _
  // Predicated region
  $region18: #{forward.1} parent=0 // pred_check
    _
  $region19: #{forward.1} parent=0 // pred_check_branch
    %23 = sbr.rel (0) target = $region21
  $region20: #{forward.1} parent=0 // pred_region
    _
  $region21: #{forward.1} parent=0 // pred_fallthru
    _
  // Predicated region
  $region22: #{forward.1} parent=0 // pred_check
    _
  $region23: #{forward.1} parent=0 // pred_check_branch
    %25 = sbr.rel (0) target = $region25
  $region24: #{forward.1} parent=0 // pred_region
    _
  $region25: #{forward.1} parent=0 // pred_fallthru
    _
  // Predicated region
  $region26: #{forward.1} parent=0 // pred_check
    _
  $region27: #{forward.1} parent=0 // pred_check_branch
    %27 = sbr.rel (0) target = $region29
  $region28: #{forward.1} parent=0 // pred_region
    _
  $region29: #{forward.1} parent=0 // pred_fallthru
    _
  // Predicated region
  $region30: #{forward.1} parent=0 // pred_check
    _
  $region31: #{forward.1} parent=0 // pred_check_branch
    %29 = sbr.rel (0) target = $region33
  $region32: #{forward.1} parent=0 // pred_region
    _
  $region33: #{forward.1} parent=0 // pred_fallthru
    _
  // Predicated region
  $region34: #{forward.1} parent=0 // pred_check
    _
  $region35: #{forward.1} parent=0 // pred_check_branch
    %31 = sbr.rel (0) target = $region37
  $region36: #{forward.1} parent=0 // pred_region
    _
  $region37: #{forward.1} parent=0 // pred_fallthru
    _
  %v33 = vld [vmem:[%s0] sm:$0xff]
  %v34 = vld [vmem:[%s0 + $0x8] sm:$0xf]
  %v35 = vld [vmem:[%s0 + $0xc] sm:$0xff]
  %v36 = vld [vmem:[%s0 + $0x14] sm:$0xf]
  %v37 = vld [vmem:[%s0 + $0x18] sm:$0xff]
  %v38 = vld [vmem:[%s0 + $0x20] sm:$0xf]
  %v39 = vld [vmem:[%s0 + $0x24] sm:$0xff]
  %v40 = vld [vmem:[%s0 + $0x2c] sm:$0xf]
  %v41 = vld [vmem:[%s0 + $0x30] sm:$0xff]
  %v42 = vld [vmem:[%s0 + $0x38] sm:$0xf]
  %v43 = vld [vmem:[%s0 + $0x3c] sm:$0xff]
  %v44 = vld [vmem:[%s0 + $0x44] sm:$0xf]
  %v45 = vld [vmem:[%s0 + $0x48] sm:$0xff]
  %v46 = vld [vmem:[%s0 + $0x50] sm:$0xf]
  %v47 = vld [vmem:[%s0 + $0x54] sm:$0xff]
  %v48 = vld [vmem:[%s0 + $0x5c] sm:$0xf]
  %v49 = vld [vmem:[%s0 + $0x60] sm:$0xff]
  %v50 = vld [vmem:[%s0 + $0x68] sm:$0xf]
  %v51 = vld [vmem:[%s0 + $0x6c] sm:$0xff]
  %v52 = vld [vmem:[%s0 + $0x74] sm:$0xf]
  %v53 = vld [vmem:[%s1] sm:$0xff]
  %v54 = vld [vmem:[%s1 + $0x8] sm:$0xff]
  %v55 = vld [vmem:[%s1 + $0x10] sm:$0xff]
  %v56 = vld [vmem:[%s1 + $0x18] sm:$0xff]
  %v57 = vld [vmem:[%s1 + $0x20] sm:$0xff]
  %v58 = vld [vmem:[%s1 + $0x28] sm:$0xff]
  %v59 = vld [vmem:[%s1 + $0x30] sm:$0xff]
  %v60 = vld [vmem:[%s1 + $0x38] sm:$0xff]
  %v61 = vld [vmem:[%s1 + $0x40] sm:$0xff]
  %v62 = vld [vmem:[%s1 + $0x48] sm:$0xff]
  %v63 = vld [vmem:[%s1 + $0x50] sm:$0xff]
  %v64 = vld [vmem:[%s1 + $0x58] sm:$0xff]
  %v65 = vld [vmem:[%s1 + $0x60] sm:$0xff]
  %v66 = vld [vmem:[%s1 + $0x68] sm:$0xff]
  %v67 = vld [vmem:[%s1 + $0x70] sm:$0xff]
  %v68 = vld [vmem:[%s1 + $0x78] sm:$0xff]
  %v69 = vld [vmem:[%s1 + $0x80] sm:$0xff]
  %v70 = vld [vmem:[%s1 + $0x88] sm:$0xff]
  %v71 = vld [vmem:[%s1 + $0x90] sm:$0xff]
  %v72 = vld [vmem:[%s1 + $0x98] sm:$0xff]
  %v73 = vld [vmem:[%s1 + $0xa0] sm:$0xff]
  %v74 = vld [vmem:[%s1 + $0xa8] sm:$0xff]
  %v75 = vld [vmem:[%s1 + $0xb0] sm:$0xff]
  %v76 = vld [vmem:[%s1 + $0xb8] sm:$0xff]
  %v77 = vld [vmem:[%s1 + $0xc0] sm:$0xff]
  %v78 = vld [vmem:[%s1 + $0xc8] sm:$0xff]
  %v79 = vld [vmem:[%s1 + $0xd0] sm:$0xff]
  %v80 = vld [vmem:[%s1 + $0xd8] sm:$0xff]
  %v81 = vld [vmem:[%s1 + $0xe0] sm:$0xff]
  %v82 = vld [vmem:[%s1 + $0xe8] sm:$0xff]
  %v83 = vld [vmem:[%s1 + $0xf0] sm:$0xff]
  %v84 = vld [vmem:[%s1 + $0xf8] sm:$0xff]
  %v85 = vld [vmem:[%s1 + $0x100] sm:$0xff]
  %v86 = vld [vmem:[%s1 + $0x108] sm:$0xff]
  %v87 = vld [vmem:[%s1 + $0x110] sm:$0xff]
  %v88 = vld [vmem:[%s1 + $0x118] sm:$0xff]
  %v89 = vld [vmem:[%s1 + $0x120] sm:$0xff]
  %v90 = vld [vmem:[%s1 + $0x128] sm:$0xff]
  %v91 = vld [vmem:[%s1 + $0x130] sm:$0xff]
  %v92 = vld [vmem:[%s1 + $0x138] sm:$0xff]
  %v93 = vld [vmem:[%s1 + $0x140] sm:$0xff]
  %v94 = vld [vmem:[%s1 + $0x148] sm:$0xff]
  %v95 = vld [vmem:[%s1 + $0x150] sm:$0xff]
  %v96 = vld [vmem:[%s1 + $0x158] sm:$0xff]
  %v97 = vld [vmem:[%s1 + $0x160] sm:$0xff]
  %v98 = vld [vmem:[%s1 + $0x168] sm:$0xff]
  %v99 = vld [vmem:[%s1 + $0x170] sm:$0xff]
  %v100 = vld [vmem:[%s1 + $0x178] sm:$0xff]
  %v101 = vld [vmem:[%s1 + $0x180] sm:$0xff]
  %v102 = vld [vmem:[%s1 + $0x188] sm:$0xff]
  %v103 = vld [vmem:[%s1 + $0x190] sm:$0xff]
  %v104 = vld [vmem:[%s1 + $0x198] sm:$0xff]
  %v105 = vld [vmem:[%s1 + $0x1a0] sm:$0xff]
  %v106 = vld [vmem:[%s1 + $0x1a8] sm:$0xff]
  %v107 = vld [vmem:[%s1 + $0x1b0] sm:$0xff]
  %v108 = vld [vmem:[%s1 + $0x1b8] sm:$0xff]
  %v109 = vld [vmem:[%s1 + $0x1c0] sm:$0xff]
  %v110 = vld [vmem:[%s1 + $0x1c8] sm:$0xff]
  %v111 = vld [vmem:[%s1 + $0x1d0] sm:$0xff]
  %v112 = vld [vmem:[%s1 + $0x1d8] sm:$0xff]
  %v113 = vld [vmem:[%s1 + $0x1e0] sm:$0xff]
  %v114 = vld [vmem:[%s1 + $0x1e8] sm:$0xff]
  %v115 = vld [vmem:[%s1 + $0x1f0] sm:$0xff]
  %v116 = vld [vmem:[%s1 + $0x1f8] sm:$0xff]
  %v117 = vld [vmem:[%s1 + $0x200] sm:$0xff]
  %v118 = vld [vmem:[%s1 + $0x208] sm:$0xff]
  %v119 = vld [vmem:[%s1 + $0x210] sm:$0x77]
  %v120 = vld [vmem:[%s1 + $0x218] sm:$0x77]
  %v121 = vld [vmem:[%s2] sm:$0xf]
  %v123 = vlaneseq
  %v124 = vshrl.u32 %v123, 7
  %v125 = vsub.s32 0, %v124
  %v126 = vrot.slane %v121, %v125
  %v127 = vlaneseq
  %v128 = vshrl.u32 %v127, 7
  %v129 = vsub.s32 1, %v128
  %v130 = vrot.slane %v121, %v129
  %v131 = vlaneseq
  %v132 = vshrl.u32 %v131, 7
  %v133 = vsub.s32 2, %v132
  %v134 = vrot.slane %v121, %v133
  %v135 = vlaneseq
  %v136 = vshrl.u32 %v135, 7
  %v137 = vsub.s32 3, %v136
  %v138 = vrot.slane %v121, %v137
  %v163 = vunpack.c.l.b16 %v33
  %v164 = vunpack.c.h.b16 %v33
  %v165 = vunpack.c.l.b16 %v34
  %v166 = vunpack.c.l.b16 %v35
  %v167 = vunpack.c.h.b16 %v35
  %v168 = vunpack.c.l.b16 %v36
  %v169 = vunpack.c.l.b16 %v37
  %v170 = vunpack.c.h.b16 %v37
  %v171 = vunpack.c.l.b16 %v38
  %v172 = vunpack.c.l.b16 %v39
  %v173 = vunpack.c.h.b16 %v39
  %v174 = vunpack.c.l.b16 %v40
  %v175 = vunpack.c.l.b16 %v41
  %v176 = vunpack.c.h.b16 %v41
  %v177 = vunpack.c.l.b16 %v42
  %v178 = vunpack.c.l.b16 %v43
  %v179 = vunpack.c.h.b16 %v43
  %v180 = vunpack.c.l.b16 %v44
  %v181 = vunpack.c.l.b16 %v45
  %v182 = vunpack.c.h.b16 %v45
  %v183 = vunpack.c.l.b16 %v46
  %v184 = vunpack.c.l.b16 %v47
  %v185 = vunpack.c.h.b16 %v47
  %v186 = vunpack.c.l.b16 %v48
  %v187 = vunpack.c.l.b16 %v49
  %v188 = vunpack.c.h.b16 %v49
  %v189 = vunpack.c.l.b16 %v50
  %v190 = vunpack.c.l.b16 %v51
  %v191 = vunpack.c.h.b16 %v51
  %v192 = vunpack.c.l.b16 %v52
  %v193 = vpack.c.b16 %v166, %v163
  %v194 = vpack.c.b16 %v167, %v164
  %v195 = vpack.c.b16 %v168, %v165
  %v196 = vpack.c.b16 %v172, %v169
  %v197 = vpack.c.b16 %v173, %v170
  %v198 = vpack.c.b16 %v174, %v171
  %v199 = vpack.c.b16 %v178, %v175
  %v200 = vpack.c.b16 %v179, %v176
  %v201 = vpack.c.b16 %v180, %v177
  %v202 = vpack.c.b16 %v184, %v181
  %v203 = vpack.c.b16 %v185, %v182
  %v204 = vpack.c.b16 %v186, %v183
  %v205 = vpack.c.b16 %v190, %v187
  %v206 = vpack.c.b16 %v191, %v188
  %v207 = vpack.c.b16 %v192, %v189
  %v286 = vunpack.c.l.b16 %v53
  %v287 = vunpack.c.h.b16 %v53
  %v288 = vunpack.c.l.b16 %v54
  %v289 = vunpack.c.h.b16 %v54
  %v290 = vunpack.c.l.b16 %v55
  %v291 = vunpack.c.h.b16 %v55
  %v292 = vunpack.c.l.b16 %v56
  %v293 = vunpack.c.h.b16 %v56
  %v294 = vunpack.c.l.b16 %v57
  %v295 = vunpack.c.h.b16 %v57
  %v296 = vunpack.c.l.b16 %v58
  %v297 = vunpack.c.h.b16 %v58
  %v298 = vunpack.c.l.b16 %v59
  %v299 = vunpack.c.h.b16 %v59
  %v300 = vunpack.c.l.b16 %v60
  %v301 = vunpack.c.h.b16 %v60
  %v302 = vunpack.c.l.b16 %v61
  %v303 = vunpack.c.h.b16 %v61
  %v304 = vunpack.c.l.b16 %v62
  %v305 = vunpack.c.h.b16 %v62
  %v306 = vunpack.c.l.b16 %v63
  %v307 = vunpack.c.h.b16 %v63
  %v308 = vunpack.c.l.b16 %v64
  %v309 = vunpack.c.h.b16 %v64
  %v310 = vunpack.c.l.b16 %v65
  %v311 = vunpack.c.h.b16 %v65
  %v312 = vunpack.c.l.b16 %v66
  %v313 = vunpack.c.h.b16 %v66
  %v314 = vunpack.c.l.b16 %v67
  %v315 = vunpack.c.h.b16 %v67
  %v316 = vunpack.c.l.b16 %v68
  %v317 = vunpack.c.h.b16 %v68
  %v318 = vunpack.c.l.b16 %v69
  %v319 = vunpack.c.h.b16 %v69
  %v320 = vunpack.c.l.b16 %v70
  %v321 = vunpack.c.h.b16 %v70
  %v322 = vunpack.c.l.b16 %v71
  %v323 = vunpack.c.h.b16 %v71
  %v324 = vunpack.c.l.b16 %v72
  %v325 = vunpack.c.h.b16 %v72
  %v326 = vunpack.c.l.b16 %v73
  %v327 = vunpack.c.h.b16 %v73
  %v328 = vunpack.c.l.b16 %v74
  %v329 = vunpack.c.h.b16 %v74
  %v330 = vunpack.c.l.b16 %v75
  %v331 = vunpack.c.h.b16 %v75
  %v332 = vunpack.c.l.b16 %v76
  %v333 = vunpack.c.h.b16 %v76
  %v334 = vunpack.c.l.b16 %v77
  %v335 = vunpack.c.h.b16 %v77
  %v336 = vunpack.c.l.b16 %v78
  %v337 = vunpack.c.h.b16 %v78
  %v338 = vunpack.c.l.b16 %v79
  %v339 = vunpack.c.h.b16 %v79
  %v340 = vunpack.c.l.b16 %v80
  %v341 = vunpack.c.h.b16 %v80
  %v342 = vunpack.c.l.b16 %v81
  %v343 = vunpack.c.h.b16 %v81
  %v344 = vunpack.c.l.b16 %v82
  %v345 = vunpack.c.h.b16 %v82
  %v346 = vunpack.c.l.b16 %v83
  %v347 = vunpack.c.h.b16 %v83
  %v348 = vunpack.c.l.b16 %v84
  %v349 = vunpack.c.h.b16 %v84
  %v350 = vunpack.c.l.b16 %v85
  %v351 = vunpack.c.h.b16 %v85
  %v352 = vunpack.c.l.b16 %v86
  %v353 = vunpack.c.h.b16 %v86
  %v354 = vunpack.c.l.b16 %v87
  %v355 = vunpack.c.h.b16 %v87
  %v356 = vunpack.c.l.b16 %v88
  %v357 = vunpack.c.h.b16 %v88
  %v358 = vunpack.c.l.b16 %v89
  %v359 = vunpack.c.h.b16 %v89
  %v360 = vunpack.c.l.b16 %v90
  %v361 = vunpack.c.h.b16 %v90
  %v362 = vunpack.c.l.b16 %v91
  %v363 = vunpack.c.h.b16 %v91
  %v364 = vunpack.c.l.b16 %v92
  %v365 = vunpack.c.h.b16 %v92
  %v366 = vunpack.c.l.b16 %v93
  %v367 = vunpack.c.h.b16 %v93
  %v368 = vunpack.c.l.b16 %v94
  %v369 = vunpack.c.h.b16 %v94
  %v370 = vunpack.c.l.b16 %v95
  %v371 = vunpack.c.h.b16 %v95
  %v372 = vunpack.c.l.b16 %v96
  %v373 = vunpack.c.h.b16 %v96
  %v374 = vunpack.c.l.b16 %v97
  %v375 = vunpack.c.h.b16 %v97
  %v376 = vunpack.c.l.b16 %v98
  %v377 = vunpack.c.h.b16 %v98
  %v378 = vunpack.c.l.b16 %v99
  %v379 = vunpack.c.h.b16 %v99
  %v380 = vunpack.c.l.b16 %v100
  %v381 = vunpack.c.h.b16 %v100
  %v382 = vunpack.c.l.b16 %v101
  %v383 = vunpack.c.h.b16 %v101
  %v384 = vunpack.c.l.b16 %v102
  %v385 = vunpack.c.h.b16 %v102
  %v386 = vunpack.c.l.b16 %v103
  %v387 = vunpack.c.h.b16 %v103
  %v388 = vunpack.c.l.b16 %v104
  %v389 = vunpack.c.h.b16 %v104
  %v390 = vunpack.c.l.b16 %v105
  %v391 = vunpack.c.h.b16 %v105
  %v392 = vunpack.c.l.b16 %v106
  %v393 = vunpack.c.h.b16 %v106
  %v394 = vunpack.c.l.b16 %v107
  %v395 = vunpack.c.h.b16 %v107
  %v396 = vunpack.c.l.b16 %v108
  %v397 = vunpack.c.h.b16 %v108
  %v398 = vunpack.c.l.b16 %v109
  %v399 = vunpack.c.h.b16 %v109
  %v400 = vunpack.c.l.b16 %v110
  %v401 = vunpack.c.h.b16 %v110
  %v402 = vunpack.c.l.b16 %v111
  %v403 = vunpack.c.h.b16 %v111
  %v404 = vunpack.c.l.b16 %v112
  %v405 = vunpack.c.h.b16 %v112
  %v406 = vunpack.c.l.b16 %v113
  %v407 = vunpack.c.h.b16 %v113
  %v408 = vunpack.c.l.b16 %v114
  %v409 = vunpack.c.h.b16 %v114
  %v410 = vunpack.c.l.b16 %v115
  %v411 = vunpack.c.h.b16 %v115
  %v412 = vunpack.c.l.b16 %v116
  %v413 = vunpack.c.h.b16 %v116
  %v414 = vunpack.c.l.b16 %v117
  %v415 = vunpack.c.h.b16 %v117
  %v416 = vunpack.c.l.b16 %v118
  %v417 = vunpack.c.h.b16 %v118
  %v418 = vunpack.c.l.b16 %v119
  %v419 = vunpack.c.h.b16 %v119
  %v420 = vunpack.c.l.b16 %v120
  %v421 = vunpack.c.h.b16 %v120
  %v422 = vpack.c.b16 %v290, %v286
  %v423 = vpack.c.b16 %v291, %v287
  %v424 = vpack.c.b16 %v292, %v288
  %v425 = vpack.c.b16 %v293, %v289
  %v426 = vpack.c.b16 %v298, %v294
  %v427 = vpack.c.b16 %v299, %v295
  %v428 = vpack.c.b16 %v300, %v296
  %v429 = vpack.c.b16 %v301, %v297
  %v430 = vpack.c.b16 %v306, %v302
  %v431 = vpack.c.b16 %v307, %v303
  %v432 = vpack.c.b16 %v308, %v304
  %v433 = vpack.c.b16 %v309, %v305
  %v434 = vpack.c.b16 %v314, %v310
  %v435 = vpack.c.b16 %v315, %v311
  %v436 = vpack.c.b16 %v316, %v312
  %v437 = vpack.c.b16 %v317, %v313
  %v438 = vpack.c.b16 %v322, %v318
  %v439 = vpack.c.b16 %v323, %v319
  %v440 = vpack.c.b16 %v324, %v320
  %v441 = vpack.c.b16 %v325, %v321
  %v442 = vpack.c.b16 %v330, %v326
  %v443 = vpack.c.b16 %v331, %v327
  %v444 = vpack.c.b16 %v332, %v328
  %v445 = vpack.c.b16 %v333, %v329
  %v446 = vpack.c.b16 %v338, %v334
  %v447 = vpack.c.b16 %v339, %v335
  %v448 = vpack.c.b16 %v340, %v336
  %v449 = vpack.c.b16 %v341, %v337
  %v450 = vpack.c.b16 %v346, %v342
  %v451 = vpack.c.b16 %v347, %v343
  %v452 = vpack.c.b16 %v348, %v344
  %v453 = vpack.c.b16 %v349, %v345
  %v454 = vpack.c.b16 %v354, %v350
  %v455 = vpack.c.b16 %v355, %v351
  %v456 = vpack.c.b16 %v356, %v352
  %v457 = vpack.c.b16 %v357, %v353
  %v458 = vpack.c.b16 %v362, %v358
  %v459 = vpack.c.b16 %v363, %v359
  %v460 = vpack.c.b16 %v364, %v360
  %v461 = vpack.c.b16 %v365, %v361
  %v462 = vpack.c.b16 %v370, %v366
  %v463 = vpack.c.b16 %v371, %v367
  %v464 = vpack.c.b16 %v372, %v368
  %v465 = vpack.c.b16 %v373, %v369
  %v466 = vpack.c.b16 %v378, %v374
  %v467 = vpack.c.b16 %v379, %v375
  %v468 = vpack.c.b16 %v380, %v376
  %v469 = vpack.c.b16 %v381, %v377
  %v470 = vpack.c.b16 %v386, %v382
  %v471 = vpack.c.b16 %v387, %v383
  %v472 = vpack.c.b16 %v388, %v384
  %v473 = vpack.c.b16 %v389, %v385
  %v474 = vpack.c.b16 %v394, %v390
  %v475 = vpack.c.b16 %v395, %v391
  %v476 = vpack.c.b16 %v396, %v392
  %v477 = vpack.c.b16 %v397, %v393
  %v478 = vpack.c.b16 %v402, %v398
  %v479 = vpack.c.b16 %v403, %v399
  %v480 = vpack.c.b16 %v404, %v400
  %v481 = vpack.c.b16 %v405, %v401
  %v482 = vpack.c.b16 %v410, %v406
  %v483 = vpack.c.b16 %v411, %v407
  %v484 = vpack.c.b16 %v412, %v408
  %v485 = vpack.c.b16 %v413, %v409
  %v486 = vpack.c.b16 %v418, %v414
  %v487 = vpack.c.b16 %v419, %v415
  %v488 = vpack.c.b16 %v420, %v416
  %v489 = vpack.c.b16 %v421, %v417
  %vm554 = vcmask 113664
  %v556 = vsel %vm554, %v195, 0
  %v559 = vsel %vm554, %v198, 0
  %v562 = vsel %vm554, %v201, 0
  %v565 = vsel %vm554, %v204, 0
  %v568 = vsel %vm554, %v207, 0
  %vm570 = vcmask 1046528
  %v572 = vsel %vm570, %v486, 0
  %v575 = vsel %vm570, %v487, 0
  %v578 = vsel %vm570, %v488, 0
  %v581 = vsel %vm570, %v489, 0
  %583 = vmatprep.subr.bf16.mxu0 %v423
  %584 = vmatpush1.bf16.msra.mxu0 %v422
  %585 = vmatprep.subr.bf16.mxu0 %v427
  %586 = vmatpush1.bf16.msra.mxu0 %v426
  %587 = vmatprep.subr.bf16.mxu0 %v431
  %588 = vmatpush1.bf16.msra.mxu0 %v430
  %589 = vmatprep.subr.bf16.mxu0 %v435
  %590 = vmatpush1.bf16.msra.mxu0 %v434
  %591 = vmatprep.subr.bf16.mxu0 %v439
  %592 = vmatpush1.bf16.msra.mxu0 %v438
  %593 = vmatprep.subr.bf16.mxu0 %v443
  %594 = vmatpush1.bf16.msra.mxu0 %v442
  %595 = vmatprep.subr.bf16.mxu0 %v447
  %596 = vmatpush1.bf16.msra.mxu0 %v446
  %597 = vmatprep.subr.bf16.mxu0 %v451
  %598 = vmatpush1.bf16.msra.mxu0 %v450
  %599 = vmatprep.subr.bf16.mxu0 %v455
  %600 = vmatpush1.bf16.msra.mxu0 %v454
  %601 = vmatprep.subr.bf16.mxu0 %v459
  %602 = vmatpush1.bf16.msra.mxu0 %v458
  %603 = vmatprep.subr.bf16.mxu0 %v463
  %604 = vmatpush1.bf16.msra.mxu0 %v462
  %605 = vmatprep.subr.bf16.mxu0 %v467
  %606 = vmatpush1.bf16.msra.mxu0 %v466
  %607 = vmatprep.subr.bf16.mxu0 %v471
  %608 = vmatpush1.bf16.msra.mxu0 %v470
  %609 = vmatprep.subr.bf16.mxu0 %v475
  %610 = vmatpush1.bf16.msra.mxu0 %v474
  %611 = vmatprep.subr.bf16.mxu0 %v479
  %612 = vmatpush1.bf16.msra.mxu0 %v478
  %613 = vmatprep.subr.bf16.mxu0 %v483
  %614 = vmatpush1.bf16.msra.mxu0 %v482
  %615 = vmatprep.mubr.bf16.mxu0 %v194
  %616 = vmatmul.mubr.bf16.gmra.mrb[0].mxu0 %v193
  %v617 = vpop.f32.mrb[0].mxu0
  %v618 = vadd.f32 %v126, %v617
  %v619 = vpop.f32.mrb[0].mxu0
  %v620 = vadd.f32 %v130, %v619
  %v621 = vpop.f32.mrb[0].mxu0
  %v622 = vadd.f32 %v126, %v621
  %v623 = vpop.f32.mrb[0].mxu0
  %v624 = vadd.f32 %v130, %v623
  %625 = vmatprep.mubr.bf16.mxu0 %v197
  %626 = vmatmul.mubr.bf16.gmra.mrb[0].mxu0 %v196
  %v627 = vpop.f32.mrb[0].mxu0
  %v628 = vadd.f32 %v126, %v627
  %v629 = vpop.f32.mrb[0].mxu0
  %v630 = vadd.f32 %v130, %v629
  %v631 = vpop.f32.mrb[0].mxu0
  %v632 = vadd.f32 %v126, %v631
  %v633 = vpop.f32.mrb[0].mxu0
  %v634 = vadd.f32 %v130, %v633
  %635 = vmatprep.mubr.bf16.mxu0 %v200
  %636 = vmatmul.mubr.bf16.gmra.mrb[0].mxu0 %v199
  %v637 = vpop.f32.mrb[0].mxu0
  %v638 = vadd.f32 %v126, %v637
  %v639 = vpop.f32.mrb[0].mxu0
  %v640 = vadd.f32 %v130, %v639
  %v641 = vpop.f32.mrb[0].mxu0
  %v642 = vadd.f32 %v126, %v641
  %v643 = vpop.f32.mrb[0].mxu0
  %v644 = vadd.f32 %v130, %v643
  %645 = vmatprep.mubr.bf16.mxu0 %v203
  %646 = vmatmul.mubr.bf16.gmra.mrb[0].mxu0 %v202
  %v647 = vpop.f32.mrb[0].mxu0
  %v648 = vadd.f32 %v126, %v647
  %v649 = vpop.f32.mrb[0].mxu0
  %v650 = vadd.f32 %v130, %v649
  %v651 = vpop.f32.mrb[0].mxu0
  %v652 = vadd.f32 %v126, %v651
  %v653 = vpop.f32.mrb[0].mxu0
  %v654 = vadd.f32 %v130, %v653
  %655 = vmatprep.mubr.bf16.mxu0 %v206
  %656 = vmatmul.mubr.bf16.gmra.mrb[0].mxu0 %v205
  %v657 = vpop.f32.mrb[0].mxu0
  %v658 = vadd.f32 %v126, %v657
  %v659 = vpop.f32.mrb[0].mxu0
  %v660 = vadd.f32 %v130, %v659
  %v661 = vpop.f32.mrb[0].mxu0
  %v662 = vadd.f32 %v126, %v661
  %v663 = vpop.f32.mrb[0].mxu0
  %v664 = vadd.f32 %v130, %v663
  %665 = vdwg.mxu0
  %666 = vmatprep.subr.bf16.mxu0 %v575
  %667 = vmatpush1.bf16.msra.mxu0 %v572
  %668 = vmatprep.subr.bf16.mxu0 0
  %669 = vmatpush1.bf16.msra.mxu0 0
  %670 = vmatprep.subr.bf16.mxu0 0
  %671 = vmatpush1.bf16.msra.mxu0 0
  %672 = vmatprep.subr.bf16.mxu0 0
  %673 = vmatpush1.bf16.msra.mxu0 0
  %674 = vmatprep.subr.bf16.mxu0 0
  %675 = vmatpush1.bf16.msra.mxu0 0
  %676 = vmatprep.subr.bf16.mxu0 0
  %677 = vmatpush1.bf16.msra.mxu0 0
  %678 = vmatprep.subr.bf16.mxu0 0
  %679 = vmatpush1.bf16.msra.mxu0 0
  %680 = vmatprep.subr.bf16.mxu0 0
  %681 = vmatpush1.bf16.msra.mxu0 0
  %682 = vmatprep.subr.bf16.mxu0 0
  %683 = vmatpush1.bf16.msra.mxu0 0
  %684 = vmatprep.subr.bf16.mxu0 0
  %685 = vmatpush1.bf16.msra.mxu0 0
  %686 = vmatprep.subr.bf16.mxu0 0
  %687 = vmatpush1.bf16.msra.mxu0 0
  %688 = vmatprep.subr.bf16.mxu0 0
  %689 = vmatpush1.bf16.msra.mxu0 0
  %690 = vmatprep.subr.bf16.mxu0 0
  %691 = vmatpush1.bf16.msra.mxu0 0
  %692 = vmatprep.subr.bf16.mxu0 0
  %693 = vmatpush1.bf16.msra.mxu0 0
  %694 = vmatprep.subr.bf16.mxu0 0
  %695 = vmatpush1.bf16.msra.mxu0 0
  %696 = vmatprep.subr.bf16.mxu0 0
  %697 = vmatpush1.bf16.msra.mxu0 0
  %698 = vmatprep.mubr.bf16.mxu0 0
  %699 = vmatmul.mubr.bf16.gmra.mrb[0].mxu0 %v556
  %v700 = vpop.f32.mrb[0].mxu0
  %v701 = vadd.f32 %v618, %v700
  %v702 = vpop.f32.mrb[0].mxu0
  %v703 = vadd.f32 %v620, %v702
  %v704 = vpop.f32.mrb[0].mxu0
  %v705 = vadd.f32 %v622, %v704
  %v706 = vpop.f32.mrb[0].mxu0
  %v707 = vadd.f32 %v624, %v706
  %708 = vmatprep.mubr.bf16.mxu0 0
  %709 = vmatmul.mubr.bf16.gmra.mrb[0].mxu0 %v559
  %v710 = vpop.f32.mrb[0].mxu0
  %v711 = vadd.f32 %v628, %v710
  %v712 = vpop.f32.mrb[0].mxu0
  %v713 = vadd.f32 %v630, %v712
  %v714 = vpop.f32.mrb[0].mxu0
  %v715 = vadd.f32 %v632, %v714
  %v716 = vpop.f32.mrb[0].mxu0
  %v717 = vadd.f32 %v634, %v716
  %718 = vmatprep.mubr.bf16.mxu0 0
  %719 = vmatmul.mubr.bf16.gmra.mrb[0].mxu0 %v562
  %v720 = vpop.f32.mrb[0].mxu0
  %v721 = vadd.f32 %v638, %v720
  %v722 = vpop.f32.mrb[0].mxu0
  %v723 = vadd.f32 %v640, %v722
  %v724 = vpop.f32.mrb[0].mxu0
  %v725 = vadd.f32 %v642, %v724
  %v726 = vpop.f32.mrb[0].mxu0
  %v727 = vadd.f32 %v644, %v726
  %728 = vmatprep.mubr.bf16.mxu0 0
  %729 = vmatmul.mubr.bf16.gmra.mrb[0].mxu0 %v565
  %v730 = vpop.f32.mrb[0].mxu0
  %v731 = vadd.f32 %v648, %v730
  %v732 = vpop.f32.mrb[0].mxu0
  %v733 = vadd.f32 %v650, %v732
  %v734 = vpop.f32.mrb[0].mxu0
  %v735 = vadd.f32 %v652, %v734
  %v736 = vpop.f32.mrb[0].mxu0
  %v737 = vadd.f32 %v654, %v736
  %738 = vmatprep.mubr.bf16.mxu0 0
  %739 = vmatmul.mubr.bf16.gmra.mrb[0].mxu0 %v568
  %v740 = vpop.f32.mrb[0].mxu0
  %v741 = vadd.f32 %v658, %v740
  %v742 = vpop.f32.mrb[0].mxu0
  %v743 = vadd.f32 %v660, %v742
  %v744 = vpop.f32.mrb[0].mxu0
  %v745 = vadd.f32 %v662, %v744
  %v746 = vpop.f32.mrb[0].mxu0
  %v747 = vadd.f32 %v664, %v746
  %748 = vdwg.mxu0
  %749 = vmatprep.subr.bf16.mxu0 %v425
  %750 = vmatpush1.bf16.msra.mxu0 %v424
  %751 = vmatprep.subr.bf16.mxu0 %v429
  %752 = vmatpush1.bf16.msra.mxu0 %v428
  %753 = vmatprep.subr.bf16.mxu0 %v433
  %754 = vmatpush1.bf16.msra.mxu0 %v432
  %755 = vmatprep.subr.bf16.mxu0 %v437
  %756 = vmatpush1.bf16.msra.mxu0 %v436
  %757 = vmatprep.subr.bf16.mxu0 %v441
  %758 = vmatpush1.bf16.msra.mxu0 %v440
  %759 = vmatprep.subr.bf16.mxu0 %v445
  %760 = vmatpush1.bf16.msra.mxu0 %v444
  %761 = vmatprep.subr.bf16.mxu0 %v449
  %762 = vmatpush1.bf16.msra.mxu0 %v448
  %763 = vmatprep.subr.bf16.mxu0 %v453
  %764 = vmatpush1.bf16.msra.mxu0 %v452
  %765 = vmatprep.subr.bf16.mxu0 %v457
  %766 = vmatpush1.bf16.msra.mxu0 %v456
  %767 = vmatprep.subr.bf16.mxu0 %v461
  %768 = vmatpush1.bf16.msra.mxu0 %v460
  %769 = vmatprep.subr.bf16.mxu0 %v465
  %770 = vmatpush1.bf16.msra.mxu0 %v464
  %771 = vmatprep.subr.bf16.mxu0 %v469
  %772 = vmatpush1.bf16.msra.mxu0 %v468
  %773 = vmatprep.subr.bf16.mxu0 %v473
  %774 = vmatpush1.bf16.msra.mxu0 %v472
  %775 = vmatprep.subr.bf16.mxu0 %v477
  %776 = vmatpush1.bf16.msra.mxu0 %v476
  %777 = vmatprep.subr.bf16.mxu0 %v481
  %778 = vmatpush1.bf16.msra.mxu0 %v480
  %779 = vmatprep.subr.bf16.mxu0 %v485
  %780 = vmatpush1.bf16.msra.mxu0 %v484
  %781 = vmatprep.mubr.bf16.mxu0 %v194
  %782 = vmatmul.mubr.bf16.gmra.mrb[0].mxu0 %v193
  %v783 = vpop.f32.mrb[0].mxu0
  %v784 = vadd.f32 %v134, %v783
  %v785 = vpop.f32.mrb[0].mxu0
  %v786 = vadd.f32 %v138, %v785
  %v787 = vpop.f32.mrb[0].mxu0
  %v788 = vadd.f32 %v134, %v787
  %v789 = vpop.f32.mrb[0].mxu0
  %v790 = vadd.f32 %v138, %v789
  %791 = vmatprep.mubr.bf16.mxu0 %v197
  %792 = vmatmul.mubr.bf16.gmra.mrb[0].mxu0 %v196
  %v793 = vpop.f32.mrb[0].mxu0
  %v794 = vadd.f32 %v134, %v793
  %v795 = vpop.f32.mrb[0].mxu0
  %v796 = vadd.f32 %v138, %v795
  %v797 = vpop.f32.mrb[0].mxu0
  %v798 = vadd.f32 %v134, %v797
  %v799 = vpop.f32.mrb[0].mxu0
  %v800 = vadd.f32 %v138, %v799
  %801 = vmatprep.mubr.bf16.mxu0 %v200
  %802 = vmatmul.mubr.bf16.gmra.mrb[0].mxu0 %v199
  %v803 = vpop.f32.mrb[0].mxu0
  %v804 = vadd.f32 %v134, %v803
  %v805 = vpop.f32.mrb[0].mxu0
  %v806 = vadd.f32 %v138, %v805
  %v807 = vpop.f32.mrb[0].mxu0
  %v808 = vadd.f32 %v134, %v807
  %v809 = vpop.f32.mrb[0].mxu0
  %v810 = vadd.f32 %v138, %v809
  %811 = vmatprep.mubr.bf16.mxu0 %v203
  %812 = vmatmul.mubr.bf16.gmra.mrb[0].mxu0 %v202
  %v813 = vpop.f32.mrb[0].mxu0
  %v814 = vadd.f32 %v134, %v813
  %v815 = vpop.f32.mrb[0].mxu0
  %v816 = vadd.f32 %v138, %v815
  %v817 = vpop.f32.mrb[0].mxu0
  %v818 = vadd.f32 %v134, %v817
  %v819 = vpop.f32.mrb[0].mxu0
  %v820 = vadd.f32 %v138, %v819
  %821 = vmatprep.mubr.bf16.mxu0 %v206
  %822 = vmatmul.mubr.bf16.gmra.mrb[0].mxu0 %v205
  %v823 = vpop.f32.mrb[0].mxu0
  %v824 = vadd.f32 %v134, %v823
  %v825 = vpop.f32.mrb[0].mxu0
  %v826 = vadd.f32 %v138, %v825
  %v827 = vpop.f32.mrb[0].mxu0
  %v828 = vadd.f32 %v134, %v827
  %v829 = vpop.f32.mrb[0].mxu0
  %v830 = vadd.f32 %v138, %v829
  %831 = vdwg.mxu0
  %832 = vmatprep.subr.bf16.mxu0 %v581
  %833 = vmatpush1.bf16.msra.mxu0 %v578
  %834 = vmatprep.subr.bf16.mxu0 0
  %835 = vmatpush1.bf16.msra.mxu0 0
  %836 = vmatprep.subr.bf16.mxu0 0
  %837 = vmatpush1.bf16.msra.mxu0 0
  %838 = vmatprep.subr.bf16.mxu0 0
  %839 = vmatpush1.bf16.msra.mxu0 0
  %840 = vmatprep.subr.bf16.mxu0 0
  %841 = vmatpush1.bf16.msra.mxu0 0
  %842 = vmatprep.subr.bf16.mxu0 0
  %843 = vmatpush1.bf16.msra.mxu0 0
  %844 = vmatprep.subr.bf16.mxu0 0
  %845 = vmatpush1.bf16.msra.mxu0 0
  %846 = vmatprep.subr.bf16.mxu0 0
  %847 = vmatpush1.bf16.msra.mxu0 0
  %848 = vmatprep.subr.bf16.mxu0 0
  %849 = vmatpush1.bf16.msra.mxu0 0
  %850 = vmatprep.subr.bf16.mxu0 0
  %851 = vmatpush1.bf16.msra.mxu0 0
  %852 = vmatprep.subr.bf16.mxu0 0
  %853 = vmatpush1.bf16.msra.mxu0 0
  %854 = vmatprep.subr.bf16.mxu0 0
  %855 = vmatpush1.bf16.msra.mxu0 0
  %856 = vmatprep.subr.bf16.mxu0 0
  %857 = vmatpush1.bf16.msra.mxu0 0
  %858 = vmatprep.subr.bf16.mxu0 0
  %859 = vmatpush1.bf16.msra.mxu0 0
  %860 = vmatprep.subr.bf16.mxu0 0
  %861 = vmatpush1.bf16.msra.mxu0 0
  %862 = vmatprep.subr.bf16.mxu0 0
  %863 = vmatpush1.bf16.msra.mxu0 0
  %864 = vmatprep.mubr.bf16.mxu0 0
  %865 = vmatmul.mubr.bf16.gmra.mrb[0].mxu0 %v556
  %v866 = vpop.f32.mrb[0].mxu0
  %v867 = vadd.f32 %v784, %v866
  %v868 = vpop.f32.mrb[0].mxu0
  %v869 = vadd.f32 %v786, %v868
  %v870 = vpop.f32.mrb[0].mxu0
  %v871 = vadd.f32 %v788, %v870
  %v872 = vpop.f32.mrb[0].mxu0
  %v873 = vadd.f32 %v790, %v872
  %874 = vmatprep.mubr.bf16.mxu0 0
  %875 = vmatmul.mubr.bf16.gmra.mrb[0].mxu0 %v559
  %v876 = vpop.f32.mrb[0].mxu0
  %v877 = vadd.f32 %v794, %v876
  %v878 = vpop.f32.mrb[0].mxu0
  %v879 = vadd.f32 %v796, %v878
  %v880 = vpop.f32.mrb[0].mxu0
  %v881 = vadd.f32 %v798, %v880
  %v882 = vpop.f32.mrb[0].mxu0
  %v883 = vadd.f32 %v800, %v882
  %884 = vmatprep.mubr.bf16.mxu0 0
  %885 = vmatmul.mubr.bf16.gmra.mrb[0].mxu0 %v562
  %v886 = vpop.f32.mrb[0].mxu0
  %v887 = vadd.f32 %v804, %v886
  %v888 = vpop.f32.mrb[0].mxu0
  %v889 = vadd.f32 %v806, %v888
  %v890 = vpop.f32.mrb[0].mxu0
  %v891 = vadd.f32 %v808, %v890
  %v892 = vpop.f32.mrb[0].mxu0
  %v893 = vadd.f32 %v810, %v892
  %894 = vmatprep.mubr.bf16.mxu0 0
  %895 = vmatmul.mubr.bf16.gmra.mrb[0].mxu0 %v565
  %v896 = vpop.f32.mrb[0].mxu0
  %v897 = vadd.f32 %v814, %v896
  %v898 = vpop.f32.mrb[0].mxu0
  %v899 = vadd.f32 %v816, %v898
  %v900 = vpop.f32.mrb[0].mxu0
  %v901 = vadd.f32 %v818, %v900
  %v902 = vpop.f32.mrb[0].mxu0
  %v903 = vadd.f32 %v820, %v902
  %904 = vmatprep.mubr.bf16.mxu0 0
  %905 = vmatmul.mubr.bf16.gmra.mrb[0].mxu0 %v568
  %v906 = vpop.f32.mrb[0].mxu0
  %v907 = vadd.f32 %v824, %v906
  %v908 = vpop.f32.mrb[0].mxu0
  %v909 = vadd.f32 %v826, %v908
  %v910 = vpop.f32.mrb[0].mxu0
  %v911 = vadd.f32 %v828, %v910
  %v912 = vpop.f32.mrb[0].mxu0
  %v913 = vadd.f32 %v830, %v912
  %914 = vdwg.mxu0
  %v915 = vmax.f32 %v701, 0.0
  %v916 = vmax.f32 %v703, 0.0
  %v917 = vmax.f32 %v867, 0.0
  %v918 = vmax.f32 %v869, 0.0
  %v919 = vmax.f32 %v705, 0.0
  %v920 = vmax.f32 %v707, 0.0
  %v921 = vmax.f32 %v871, 0.0
  %v922 = vmax.f32 %v873, 0.0
  %v923 = vmax.f32 %v711, 0.0
  %v924 = vmax.f32 %v713, 0.0
  %v925 = vmax.f32 %v877, 0.0
  %v926 = vmax.f32 %v879, 0.0
  %v927 = vmax.f32 %v715, 0.0
  %v928 = vmax.f32 %v717, 0.0
  %v929 = vmax.f32 %v881, 0.0
  %v930 = vmax.f32 %v883, 0.0
  %v931 = vmax.f32 %v721, 0.0
  %v932 = vmax.f32 %v723, 0.0
  %v933 = vmax.f32 %v887, 0.0
  %v934 = vmax.f32 %v889, 0.0
  %v935 = vmax.f32 %v725, 0.0
  %v936 = vmax.f32 %v727, 0.0
  %v937 = vmax.f32 %v891, 0.0
  %v938 = vmax.f32 %v893, 0.0
  %v939 = vmax.f32 %v731, 0.0
  %v940 = vmax.f32 %v733, 0.0
  %v941 = vmax.f32 %v897, 0.0
  %v942 = vmax.f32 %v899, 0.0
  %v943 = vmax.f32 %v735, 0.0
  %v944 = vmax.f32 %v737, 0.0
  %v945 = vmax.f32 %v901, 0.0
  %v946 = vmax.f32 %v903, 0.0
  %v947 = vmax.f32 %v741, 0.0
  %v948 = vmax.f32 %v743, 0.0
  %v949 = vmax.f32 %v907, 0.0
  %v950 = vmax.f32 %v909, 0.0
  %v951 = vmax.f32 %v745, 0.0
  %v952 = vmax.f32 %v747, 0.0
  %v953 = vmax.f32 %v911, 0.0
  %v954 = vmax.f32 %v913, 0.0
  %v955 = vlaneseq
  %v956 = vshrl.u32 %v955, 7
  %v957 = vadd.s32 %v956, 8
  %v958 = vadd.s32 %v956, 16
  %v959 = vadd.s32 %v956, 24
  %v960 = vadd.s32 %v956, 32
  %v961 = vadd.s32 %v956, 40
  %v962 = vadd.s32 %v956, 48
  %v963 = vadd.s32 %v956, 56
  %v964 = vadd.s32 %v956, 64
  %v965 = vadd.s32 %v956, 72
  %v966 = vlaneseq
  %v967 = vand.u32 %v966, 127
  %v968 = vadd.s32 %v967, 128
  %v969 = vadd.s32 %v967, 256
  %v970 = vadd.s32 %v967, 384
  %vm971 = vcmp.lt.s32.totalorder %v956, 8
  %vm972 = vcmp.lt.s32.totalorder %v957, 8
  %vm973 = vcmp.lt.s32.totalorder %v958, 8
  %vm974 = vcmp.lt.s32.totalorder %v959, 8
  %vm975 = vcmp.lt.s32.totalorder %v960, 8
  %vm976 = vcmp.lt.s32.totalorder %v961, 8
  %vm977 = vcmp.lt.s32.totalorder %v962, 8
  %vm978 = vcmp.lt.s32.totalorder %v963, 8
  %vm979 = vcmp.lt.s32.totalorder %v964, 8
  %vm980 = vcmp.lt.s32.totalorder %v965, 8
  %vm981 = vcmp.lt.s32.totalorder %v967, 30
  %vm982 = vcmp.lt.s32.totalorder %v968, 30
  %vm983 = vcmp.lt.s32.totalorder %v969, 30
  %vm984 = vcmp.lt.s32.totalorder %v970, 30
  %vm985 = vmand %vm971, %vm981
  %vm986 = vmand %vm971, %vm982
  %vm987 = vmand %vm971, %vm983
  %vm988 = vmand %vm971, %vm984
  %vm989 = vmand %vm972, %vm981
  %vm990 = vmand %vm972, %vm982
  %vm991 = vmand %vm972, %vm983
  %vm992 = vmand %vm972, %vm984
  %vm993 = vmand %vm973, %vm981
  %vm994 = vmand %vm973, %vm982
  %vm995 = vmand %vm973, %vm983
  %vm996 = vmand %vm973, %vm984
  %vm997 = vmand %vm974, %vm981
  %vm998 = vmand %vm974, %vm982
  %vm999 = vmand %vm974, %vm983
  %vm1000 = vmand %vm974, %vm984
  %vm1001 = vmand %vm975, %vm981
  %vm1002 = vmand %vm975, %vm982
  %vm1003 = vmand %vm975, %vm983
  %vm1004 = vmand %vm975, %vm984
  %vm1005 = vmand %vm976, %vm981
  %vm1006 = vmand %vm976, %vm982
  %vm1007 = vmand %vm976, %vm983
  %vm1008 = vmand %vm976, %vm984
  %vm1009 = vmand %vm977, %vm981
  %vm1010 = vmand %vm977, %vm982
  %vm1011 = vmand %vm977, %vm983
  %vm1012 = vmand %vm977, %vm984
  %vm1013 = vmand %vm978, %vm981
  %vm1014 = vmand %vm978, %vm982
  %vm1015 = vmand %vm978, %vm983
  %vm1016 = vmand %vm978, %vm984
  %vm1017 = vmand %vm979, %vm981
  %vm1018 = vmand %vm979, %vm982
  %vm1019 = vmand %vm979, %vm983
  %vm1020 = vmand %vm979, %vm984
  %vm1021 = vmand %vm980, %vm981
  %vm1022 = vmand %vm980, %vm982
  %vm1023 = vmand %vm980, %vm983
  %vm1024 = vmand %vm980, %vm984
  %v1025 = vsel %vm985, 0.0, %v915
  %v1026 = vsel %vm986, 0.0, %v916
  %v1027 = vsel %vm987, 0.0, %v917
  %v1028 = vsel %vm988, 0.0, %v918
  %v1029 = vsel %vm989, 0.0, %v919
  %v1030 = vsel %vm990, 0.0, %v920
  %v1031 = vsel %vm991, 0.0, %v921
  %v1032 = vsel %vm992, 0.0, %v922
  %v1033 = vsel %vm993, 0.0, %v923
  %v1034 = vsel %vm994, 0.0, %v924
  %v1035 = vsel %vm995, 0.0, %v925
  %v1036 = vsel %vm996, 0.0, %v926
  %v1037 = vsel %vm997, 0.0, %v927
  %v1038 = vsel %vm998, 0.0, %v928
  %v1039 = vsel %vm999, 0.0, %v929
  %v1040 = vsel %vm1000, 0.0, %v930
  %v1041 = vsel %vm1001, 0.0, %v931
  %v1042 = vsel %vm1002, 0.0, %v932
  %v1043 = vsel %vm1003, 0.0, %v933
  %v1044 = vsel %vm1004, 0.0, %v934
  %v1045 = vsel %vm1005, 0.0, %v935
  %v1046 = vsel %vm1006, 0.0, %v936
  %v1047 = vsel %vm1007, 0.0, %v937
  %v1048 = vsel %vm1008, 0.0, %v938
  %v1049 = vsel %vm1009, 0.0, %v939
  %v1050 = vsel %vm1010, 0.0, %v940
  %v1051 = vsel %vm1011, 0.0, %v941
  %v1052 = vsel %vm1012, 0.0, %v942
  %v1053 = vsel %vm1013, 0.0, %v943
  %v1054 = vsel %vm1014, 0.0, %v944
  %v1055 = vsel %vm1015, 0.0, %v945
  %v1056 = vsel %vm1016, 0.0, %v946
  %v1057 = vsel %vm1017, 0.0, %v947
  %v1058 = vsel %vm1018, 0.0, %v948
  %v1059 = vsel %vm1019, 0.0, %v949
  %v1060 = vsel %vm1020, 0.0, %v950
  %v1061 = vsel %vm1021, 0.0, %v951
  %v1062 = vsel %vm1022, 0.0, %v952
  %v1063 = vsel %vm1023, 0.0, %v953
  %v1064 = vsel %vm1024, 0.0, %v954
  %v1065 = vpack.c.bf16 %v1029, %v1025
  %v1066 = vpack.c.bf16 %v1030, %v1026
  %v1067 = vpack.c.bf16 %v1031, %v1027
  %v1068 = vpack.c.bf16 %v1032, %v1028
  %v1069 = vpack.c.bf16 %v1037, %v1033
  %v1070 = vpack.c.bf16 %v1038, %v1034
  %v1071 = vpack.c.bf16 %v1039, %v1035
  %v1072 = vpack.c.bf16 %v1040, %v1036
  %v1073 = vpack.c.bf16 %v1045, %v1041
  %v1074 = vpack.c.bf16 %v1046, %v1042
  %v1075 = vpack.c.bf16 %v1047, %v1043
  %v1076 = vpack.c.bf16 %v1048, %v1044
  %v1077 = vpack.c.bf16 %v1053, %v1049
  %v1078 = vpack.c.bf16 %v1054, %v1050
  %v1079 = vpack.c.bf16 %v1055, %v1051
  %v1080 = vpack.c.bf16 %v1056, %v1052
  %v1081 = vpack.c.bf16 %v1061, %v1057
  %v1082 = vpack.c.bf16 %v1062, %v1058
  %v1083 = vpack.c.bf16 %v1063, %v1059
  %v1084 = vpack.c.bf16 %v1064, %v1060
  %v1085 = vld [vmem:[%s3] sm:$0xf]
  %v1086 = vld [vmem:[%s3 + $0x4] sm:$0xf]
  %v1087 = vld [vmem:[%s3 + $0x8] sm:$0xf]
  %v1088 = vld [vmem:[%s3 + $0xc] sm:$0xf]
  %v1089 = vld [vmem:[%s3 + $0x10] sm:$0xf]
  %v1090 = vld [vmem:[%s3 + $0x14] sm:$0xf]
  %v1091 = vld [vmem:[%s3 + $0x18] sm:$0xf]
  %v1092 = vld [vmem:[%s3 + $0x1c] sm:$0xf]
  %v1093 = vld [vmem:[%s3 + $0x20] sm:$0xf]
  %v1094 = vld [vmem:[%s3 + $0x24] sm:$0xf]
  %v1095 = vld [vmem:[%s3 + $0x28] sm:$0xf]
  %v1096 = vld [vmem:[%s3 + $0x2c] sm:$0xf]
  %v1097 = vld [vmem:[%s3 + $0x30] sm:$0xf]
  %v1098 = vld [vmem:[%s3 + $0x34] sm:$0xf]
  %v1099 = vld [vmem:[%s3 + $0x38] sm:$0xf]
  %v1100 = vld [vmem:[%s3 + $0x3c] sm:$0xf]
  %v1101 = vld [vmem:[%s3 + $0x40] sm:$0xf]
  %v1102 = vld [vmem:[%s3 + $0x44] sm:$0xf]
  %v1103 = vld [vmem:[%s3 + $0x48] sm:$0xf]
  %v1104 = vld [vmem:[%s3 + $0x4c] sm:$0xf]
  %v1105 = vld [vmem:[%s3 + $0x50] sm:$0xf]
  %v1106 = vld [vmem:[%s3 + $0x54] sm:$0xf]
  %v1107 = vld [vmem:[%s3 + $0x58] sm:$0xf]
  %v1108 = vld [vmem:[%s3 + $0x5c] sm:$0xf]
  %v1109 = vld [vmem:[%s3 + $0x60] sm:$0xf]
  %v1110 = vld [vmem:[%s3 + $0x64] sm:$0xf]
  %v1111 = vld [vmem:[%s3 + $0x68] sm:$0xf]
  %v1112 = vld [vmem:[%s3 + $0x6c] sm:$0xf]
  %v1113 = vld [vmem:[%s3 + $0x70] sm:$0xf]
  %v1114 = vld [vmem:[%s3 + $0x74] sm:$0xf]
  %v1115 = vld [vmem:[%s3 + $0x78] sm:$0xf]
  %v1116 = vld [vmem:[%s3 + $0x7c] sm:$0xf]
  %v1117 = vld [vmem:[%s3 + $0x80] sm:$0xf]
  %v1118 = vld [vmem:[%s3 + $0x84] sm:$0xf]
  %v1119 = vld [vmem:[%s3 + $0x88] sm:$0xf]
  %v1120 = vld [vmem:[%s3 + $0x8c] sm:$0xf]
  %v1121 = vld [vmem:[%s3 + $0x90] sm:$0xf]
  %v1122 = vld [vmem:[%s3 + $0x94] sm:$0xf]
  %v1123 = vld [vmem:[%s3 + $0x98] sm:$0xf]
  %v1124 = vld [vmem:[%s3 + $0x9c] sm:$0xf]
  %v1125 = vld [vmem:[%s3 + $0xa0] sm:$0xf]
  %v1126 = vld [vmem:[%s3 + $0xa4] sm:$0xf]
  %v1127 = vld [vmem:[%s3 + $0xa8] sm:$0xf]
  %v1128 = vld [vmem:[%s3 + $0xac] sm:$0xf]
  %v1129 = vld [vmem:[%s3 + $0xb0] sm:$0xf]
  %v1130 = vld [vmem:[%s3 + $0xb4] sm:$0xf]
  %v1131 = vld [vmem:[%s3 + $0xb8] sm:$0xf]
  %v1132 = vld [vmem:[%s3 + $0xbc] sm:$0xf]
  %v1133 = vld [vmem:[%s3 + $0xc0] sm:$0xf]
  %v1134 = vld [vmem:[%s3 + $0xc4] sm:$0xf]
  %v1135 = vld [vmem:[%s3 + $0xc8] sm:$0xf]
  %v1136 = vld [vmem:[%s3 + $0xcc] sm:$0xf]
  %v1137 = vld [vmem:[%s3 + $0xd0] sm:$0xf]
  %v1138 = vld [vmem:[%s3 + $0xd4] sm:$0xf]
  %v1139 = vld [vmem:[%s3 + $0xd8] sm:$0xf]
  %v1140 = vld [vmem:[%s3 + $0xdc] sm:$0xf]
  %v1141 = vld [vmem:[%s3 + $0xe0] sm:$0x1]
  %v1142 = vld [vmem:[%s4] sm:$0x1]
  %v1144 = vlaneseq
  %v1145 = vshrl.u32 %v1144, 7
  %v1146 = vsub.s32 0, %v1145
  %v1147 = vrot.slane %v1142, %v1146
  %v1206 = vunpack.c.l.b16 %v1085
  %v1207 = vunpack.c.l.b16 %v1086
  %v1208 = vunpack.c.l.b16 %v1087
  %v1209 = vunpack.c.l.b16 %v1088
  %v1210 = vunpack.c.l.b16 %v1089
  %v1211 = vunpack.c.l.b16 %v1090
  %v1212 = vunpack.c.l.b16 %v1091
  %v1213 = vunpack.c.l.b16 %v1092
  %v1214 = vunpack.c.l.b16 %v1093
  %v1215 = vunpack.c.l.b16 %v1094
  %v1216 = vunpack.c.l.b16 %v1095
  %v1217 = vunpack.c.l.b16 %v1096
  %v1218 = vunpack.c.l.b16 %v1097
  %v1219 = vunpack.c.l.b16 %v1098
  %v1220 = vunpack.c.l.b16 %v1099
  %v1221 = vunpack.c.l.b16 %v1100
  %v1222 = vunpack.c.l.b16 %v1101
  %v1223 = vunpack.c.l.b16 %v1102
  %v1224 = vunpack.c.l.b16 %v1103
  %v1225 = vunpack.c.l.b16 %v1104
  %v1226 = vunpack.c.l.b16 %v1105
  %v1227 = vunpack.c.l.b16 %v1106
  %v1228 = vunpack.c.l.b16 %v1107
  %v1229 = vunpack.c.l.b16 %v1108
  %v1230 = vunpack.c.l.b16 %v1109
  %v1231 = vunpack.c.l.b16 %v1110
  %v1232 = vunpack.c.l.b16 %v1111
  %v1233 = vunpack.c.l.b16 %v1112
  %v1234 = vunpack.c.l.b16 %v1113
  %v1235 = vunpack.c.l.b16 %v1114
  %v1236 = vunpack.c.l.b16 %v1115
  %v1237 = vunpack.c.l.b16 %v1116
  %v1238 = vunpack.c.l.b16 %v1117
  %v1239 = vunpack.c.l.b16 %v1118
  %v1240 = vunpack.c.l.b16 %v1119
  %v1241 = vunpack.c.l.b16 %v1120
  %v1242 = vunpack.c.l.b16 %v1121
  %v1243 = vunpack.c.l.b16 %v1122
  %v1244 = vunpack.c.l.b16 %v1123
  %v1245 = vunpack.c.l.b16 %v1124
  %v1246 = vunpack.c.l.b16 %v1125
  %v1247 = vunpack.c.l.b16 %v1126
  %v1248 = vunpack.c.l.b16 %v1127
  %v1249 = vunpack.c.l.b16 %v1128
  %v1250 = vunpack.c.l.b16 %v1129
  %v1251 = vunpack.c.l.b16 %v1130
  %v1252 = vunpack.c.l.b16 %v1131
  %v1253 = vunpack.c.l.b16 %v1132
  %v1254 = vunpack.c.l.b16 %v1133
  %v1255 = vunpack.c.l.b16 %v1134
  %v1256 = vunpack.c.l.b16 %v1135
  %v1257 = vunpack.c.l.b16 %v1136
  %v1258 = vunpack.c.l.b16 %v1137
  %v1259 = vunpack.c.l.b16 %v1138
  %v1260 = vunpack.c.l.b16 %v1139
  %v1261 = vunpack.c.l.b16 %v1140
  %v1262 = vunpack.c.l.b16 %v1141
  %v1263 = vpack.c.b16 %v1207, %v1206
  %v1264 = vpack.c.b16 %v1209, %v1208
  %v1265 = vpack.c.b16 %v1211, %v1210
  %v1266 = vpack.c.b16 %v1213, %v1212
  %v1267 = vpack.c.b16 %v1215, %v1214
  %v1268 = vpack.c.b16 %v1217, %v1216
  %v1269 = vpack.c.b16 %v1219, %v1218
  %v1270 = vpack.c.b16 %v1221, %v1220
  %v1271 = vpack.c.b16 %v1223, %v1222
  %v1272 = vpack.c.b16 %v1225, %v1224
  %v1273 = vpack.c.b16 %v1227, %v1226
  %v1274 = vpack.c.b16 %v1229, %v1228
  %v1275 = vpack.c.b16 %v1231, %v1230
  %v1276 = vpack.c.b16 %v1233, %v1232
  %v1277 = vpack.c.b16 %v1235, %v1234
  %v1278 = vpack.c.b16 %v1237, %v1236
  %v1279 = vpack.c.b16 %v1239, %v1238
  %v1280 = vpack.c.b16 %v1241, %v1240
  %v1281 = vpack.c.b16 %v1243, %v1242
  %v1282 = vpack.c.b16 %v1245, %v1244
  %v1283 = vpack.c.b16 %v1247, %v1246
  %v1284 = vpack.c.b16 %v1249, %v1248
  %v1285 = vpack.c.b16 %v1251, %v1250
  %v1286 = vpack.c.b16 %v1253, %v1252
  %v1287 = vpack.c.b16 %v1255, %v1254
  %v1288 = vpack.c.b16 %v1257, %v1256
  %v1289 = vpack.c.b16 %v1259, %v1258
  %v1290 = vpack.c.b16 %v1261, %v1260
  %v1291 = vpack.c.b16 %v1262, %v1262
  %vm1320 = vcmask 539648
  %v1322 = vsel %vm1320, %v1068, 0
  %v1325 = vsel %vm1320, %v1072, 0
  %v1328 = vsel %vm1320, %v1076, 0
  %v1331 = vsel %vm1320, %v1080, 0
  %v1334 = vsel %vm1320, %v1084, 0
  %vm1336 = vcmask 1040384
  %v1338 = vsel %vm1336, %v1291, 0
  %1340 = vmatprep.subr.bf16.mxu0 0
  %1341 = vmatpush1.bf16.msra.mxu0 %v1263
  %1342 = vmatprep.subr.bf16.mxu0 0
  %1343 = vmatpush1.bf16.msra.mxu0 %v1264
  %1344 = vmatprep.subr.bf16.mxu0 0
  %1345 = vmatpush1.bf16.msra.mxu0 %v1265
  %1346 = vmatprep.subr.bf16.mxu0 0
  %1347 = vmatpush1.bf16.msra.mxu0 %v1266
  %1348 = vmatprep.subr.bf16.mxu0 0
  %1349 = vmatpush1.bf16.msra.mxu0 %v1267
  %1350 = vmatprep.subr.bf16.mxu0 0
  %1351 = vmatpush1.bf16.msra.mxu0 %v1268
  %1352 = vmatprep.subr.bf16.mxu0 0
  %1353 = vmatpush1.bf16.msra.mxu0 %v1269
  %1354 = vmatprep.subr.bf16.mxu0 0
  %1355 = vmatpush1.bf16.msra.mxu0 %v1270
  %1356 = vmatprep.subr.bf16.mxu0 0
  %1357 = vmatpush1.bf16.msra.mxu0 %v1271
  %1358 = vmatprep.subr.bf16.mxu0 0
  %1359 = vmatpush1.bf16.msra.mxu0 %v1272
  %1360 = vmatprep.subr.bf16.mxu0 0
  %1361 = vmatpush1.bf16.msra.mxu0 %v1273
  %1362 = vmatprep.subr.bf16.mxu0 0
  %1363 = vmatpush1.bf16.msra.mxu0 %v1274
  %1364 = vmatprep.subr.bf16.mxu0 0
  %1365 = vmatpush1.bf16.msra.mxu0 %v1275
  %1366 = vmatprep.subr.bf16.mxu0 0
  %1367 = vmatpush1.bf16.msra.mxu0 %v1276
  %1368 = vmatprep.subr.bf16.mxu0 0
  %1369 = vmatpush1.bf16.msra.mxu0 %v1277
  %1370 = vmatprep.subr.bf16.mxu0 0
  %1371 = vmatpush1.bf16.msra.mxu0 %v1278
  %1372 = vmatprep.mubr.bf16.mxu0 %v1066
  %1373 = vmatmul.mubr.bf16.gmra.mrb[0].mxu0 %v1065
  %v1374 = vpop.f32.mrb[0].mxu0
  %v1375 = vadd.f32 %v1147, %v1374
  %v1376 = vpop.f32.mrb[0].mxu0
  %v1377 = vpop.f32.mrb[0].mxu0
  %v1378 = vadd.f32 %v1147, %v1377
  %v1379 = vpop.f32.mrb[0].mxu0
  %1380 = vmatprep.mubr.bf16.mxu0 %v1070
  %1381 = vmatmul.mubr.bf16.gmra.mrb[0].mxu0 %v1069
  %v1382 = vpop.f32.mrb[0].mxu0
  %v1383 = vadd.f32 %v1147, %v1382
  %v1384 = vpop.f32.mrb[0].mxu0
  %v1385 = vpop.f32.mrb[0].mxu0
  %v1386 = vadd.f32 %v1147, %v1385
  %v1387 = vpop.f32.mrb[0].mxu0
  %1388 = vmatprep.mubr.bf16.mxu0 %v1074
  %1389 = vmatmul.mubr.bf16.gmra.mrb[0].mxu0 %v1073
  %v1390 = vpop.f32.mrb[0].mxu0
  %v1391 = vadd.f32 %v1147, %v1390
  %v1392 = vpop.f32.mrb[0].mxu0
  %v1393 = vpop.f32.mrb[0].mxu0
  %v1394 = vadd.f32 %v1147, %v1393
  %v1395 = vpop.f32.mrb[0].mxu0
  %1396 = vmatprep.mubr.bf16.mxu0 %v1078
  %1397 = vmatmul.mubr.bf16.gmra.mrb[0].mxu0 %v1077
  %v1398 = vpop.f32.mrb[0].mxu0
  %v1399 = vadd.f32 %v1147, %v1398
  %v1400 = vpop.f32.mrb[0].mxu0
  %v1401 = vpop.f32.mrb[0].mxu0
  %v1402 = vadd.f32 %v1147, %v1401
  %v1403 = vpop.f32.mrb[0].mxu0
  %1404 = vmatprep.mubr.bf16.mxu0 %v1082
  %1405 = vmatmul.mubr.bf16.gmra.mrb[0].mxu0 %v1081
  %v1406 = vpop.f32.mrb[0].mxu0
  %v1407 = vadd.f32 %v1147, %v1406
  %v1408 = vpop.f32.mrb[0].mxu0
  %v1409 = vpop.f32.mrb[0].mxu0
  %v1410 = vadd.f32 %v1147, %v1409
  %v1411 = vpop.f32.mrb[0].mxu0
  %1412 = vdwg.mxu0
  %1413 = vmatprep.subr.bf16.mxu0 0
  %1414 = vmatpush1.bf16.msra.mxu0 %v1279
  %1415 = vmatprep.subr.bf16.mxu0 0
  %1416 = vmatpush1.bf16.msra.mxu0 %v1280
  %1417 = vmatprep.subr.bf16.mxu0 0
  %1418 = vmatpush1.bf16.msra.mxu0 %v1281
  %1419 = vmatprep.subr.bf16.mxu0 0
  %1420 = vmatpush1.bf16.msra.mxu0 %v1282
  %1421 = vmatprep.subr.bf16.mxu0 0
  %1422 = vmatpush1.bf16.msra.mxu0 %v1283
  %1423 = vmatprep.subr.bf16.mxu0 0
  %1424 = vmatpush1.bf16.msra.mxu0 %v1284
  %1425 = vmatprep.subr.bf16.mxu0 0
  %1426 = vmatpush1.bf16.msra.mxu0 %v1285
  %1427 = vmatprep.subr.bf16.mxu0 0
  %1428 = vmatpush1.bf16.msra.mxu0 %v1286
  %1429 = vmatprep.subr.bf16.mxu0 0
  %1430 = vmatpush1.bf16.msra.mxu0 %v1287
  %1431 = vmatprep.subr.bf16.mxu0 0
  %1432 = vmatpush1.bf16.msra.mxu0 %v1288
  %1433 = vmatprep.subr.bf16.mxu0 0
  %1434 = vmatpush1.bf16.msra.mxu0 %v1289
  %1435 = vmatprep.subr.bf16.mxu0 0
  %1436 = vmatpush1.bf16.msra.mxu0 %v1290
  %1437 = vmatprep.subr.bf16.mxu0 0
  %1438 = vmatpush1.bf16.msra.mxu0 %v1338
  %1439 = vmatprep.subr.bf16.mxu0 0
  %1440 = vmatpush1.bf16.msra.mxu0 0
  %1441 = vmatprep.subr.bf16.mxu0 0
  %1442 = vmatpush1.bf16.msra.mxu0 0
  %1443 = vmatprep.subr.bf16.mxu0 0
  %1444 = vmatpush1.bf16.msra.mxu0 0
  %1445 = vmatprep.mubr.bf16.mxu0 %v1322
  %1446 = vmatmul.mubr.bf16.gmra.mrb[0].mxu0 %v1067
  %v1447 = vpop.f32.mrb[0].mxu0
  %v1448 = vadd.f32 %v1375, %v1447
  %v1449 = vpop.f32.mrb[0].mxu0
  %v1450 = vpop.f32.mrb[0].mxu0
  %v1451 = vadd.f32 %v1378, %v1450
  %v1452 = vpop.f32.mrb[0].mxu0
  %1453 = vmatprep.mubr.bf16.mxu0 %v1325
  %1454 = vmatmul.mubr.bf16.gmra.mrb[0].mxu0 %v1071
  %v1455 = vpop.f32.mrb[0].mxu0
  %v1456 = vadd.f32 %v1383, %v1455
  %v1457 = vpop.f32.mrb[0].mxu0
  %v1458 = vpop.f32.mrb[0].mxu0
  %v1459 = vadd.f32 %v1386, %v1458
  %v1460 = vpop.f32.mrb[0].mxu0
  %1461 = vmatprep.mubr.bf16.mxu0 %v1328
  %1462 = vmatmul.mubr.bf16.gmra.mrb[0].mxu0 %v1075
  %v1463 = vpop.f32.mrb[0].mxu0
  %v1464 = vadd.f32 %v1391, %v1463
  %v1465 = vpop.f32.mrb[0].mxu0
  %v1466 = vpop.f32.mrb[0].mxu0
  %v1467 = vadd.f32 %v1394, %v1466
  %v1468 = vpop.f32.mrb[0].mxu0
  %1469 = vmatprep.mubr.bf16.mxu0 %v1331
  %1470 = vmatmul.mubr.bf16.gmra.mrb[0].mxu0 %v1079
  %v1471 = vpop.f32.mrb[0].mxu0
  %v1472 = vadd.f32 %v1399, %v1471
  %v1473 = vpop.f32.mrb[0].mxu0
  %v1474 = vpop.f32.mrb[0].mxu0
  %v1475 = vadd.f32 %v1402, %v1474
  %v1476 = vpop.f32.mrb[0].mxu0
  %1477 = vmatprep.mubr.bf16.mxu0 %v1334
  %1478 = vmatmul.mubr.bf16.gmra.mrb[0].mxu0 %v1083
  %v1479 = vpop.f32.mrb[0].mxu0
  %v1480 = vadd.f32 %v1407, %v1479
  %v1481 = vpop.f32.mrb[0].mxu0
  %v1482 = vpop.f32.mrb[0].mxu0
  %v1483 = vadd.f32 %v1410, %v1482
  %v1484 = vpop.f32.mrb[0].mxu0
  %1485 = vdwg.mxu0
  %v1486 = vmax.f32 %v1448, 0.0
  %v1487 = vmax.f32 %v1451, 0.0
  %v1488 = vmax.f32 %v1456, 0.0
  %v1489 = vmax.f32 %v1459, 0.0
  %v1490 = vmax.f32 %v1464, 0.0
  %v1491 = vmax.f32 %v1467, 0.0
  %v1492 = vmax.f32 %v1472, 0.0
  %v1493 = vmax.f32 %v1475, 0.0
  %v1494 = vmax.f32 %v1480, 0.0
  %v1495 = vmax.f32 %v1483, 0.0
  %v1496 = vpack.c.bf16 %v1487, %v1486
  %v1497 = vpack.c.bf16 %v1489, %v1488
  %v1498 = vpack.c.bf16 %v1491, %v1490
  %v1499 = vpack.c.bf16 %v1493, %v1492
  %v1500 = vpack.c.bf16 %v1495, %v1494
  %v1501 = vld [vmem:[%s5] sm:$0xf]
  %v1502 = vld [vmem:[%s5 + $0x4] sm:$0xf]
  %v1503 = vld [vmem:[%s5 + $0x8] sm:$0xf]
  %v1504 = vld [vmem:[%s5 + $0xc] sm:$0xf]
  %v1505 = vld [vmem:[%s5 + $0x10] sm:$0xf]
  %v1506 = vld [vmem:[%s5 + $0x14] sm:$0xf]
  %v1507 = vld [vmem:[%s5 + $0x18] sm:$0xf]
  %v1508 = vld [vmem:[%s5 + $0x1c] sm:$0xf]
  %v1509 = vld [vmem:[%s5 + $0x20] sm:$0xf]
  %v1510 = vld [vmem:[%s5 + $0x24] sm:$0xf]
  %v1511 = vld [vmem:[%s5 + $0x28] sm:$0xf]
  %v1512 = vld [vmem:[%s5 + $0x2c] sm:$0xf]
  %v1513 = vld [vmem:[%s5 + $0x30] sm:$0x3]
  %s1514 = scalar_lea.vmem %s5, 52
  %v1515 = vld [vmem:[%s1514] sm:$0xf]
  %v1516 = vld [vmem:[%s1514 + $0x4] sm:$0xf]
  %v1517 = vld [vmem:[%s1514 + $0x8] sm:$0xf]
  %v1518 = vld [vmem:[%s1514 + $0xc] sm:$0xf]
  %v1519 = vld [vmem:[%s1514 + $0x10] sm:$0xf]
  %v1520 = vld [vmem:[%s1514 + $0x14] sm:$0xf]
  %v1521 = vld [vmem:[%s1514 + $0x18] sm:$0xf]
  %v1522 = vld [vmem:[%s1514 + $0x1c] sm:$0xf]
  %v1523 = vld [vmem:[%s1514 + $0x20] sm:$0xf]
  %v1524 = vld [vmem:[%s1514 + $0x24] sm:$0xf]
  %v1525 = vld [vmem:[%s1514 + $0x28] sm:$0xf]
  %v1526 = vld [vmem:[%s1514 + $0x2c] sm:$0xf]
  %v1527 = vld [vmem:[%s1514 + $0x30] sm:$0x3]
  %v1529 = vrot.slane %v1496, 4
  %v1543 = vunpack.c.l.b16 %v1515
  %v1544 = vunpack.c.l.b16 %v1516
  %v1545 = vunpack.c.l.b16 %v1517
  %v1546 = vunpack.c.l.b16 %v1518
  %v1547 = vunpack.c.l.b16 %v1519
  %v1548 = vunpack.c.l.b16 %v1520
  %v1549 = vunpack.c.l.b16 %v1521
  %v1550 = vunpack.c.l.b16 %v1522
  %v1551 = vunpack.c.l.b16 %v1523
  %v1552 = vunpack.c.l.b16 %v1524
  %v1553 = vunpack.c.l.b16 %v1525
  %v1554 = vunpack.c.l.b16 %v1526
  %v1555 = vunpack.c.l.b16 %v1527
  %v1556 = vpack.c.b16 %v1544, %v1543
  %v1557 = vpack.c.b16 %v1546, %v1545
  %v1558 = vpack.c.b16 %v1548, %v1547
  %v1559 = vpack.c.b16 %v1550, %v1549
  %v1560 = vpack.c.b16 %v1552, %v1551
  %v1561 = vpack.c.b16 %v1554, %v1553
  %v1562 = vpack.c.b16 %v1555, %v1555
  %vm1569 = vcmask 818176
  %v1571 = vsel %vm1569, %v1529, 0
  %vm1573 = vcmask 1041408
  %v1575 = vsel %vm1573, %v1562, 0
  %1577 = vmatprep.subr.bf16.mxu0 0
  %1578 = vmatpush1.bf16.msra.mxu0 %v1556
  %1579 = vmatprep.subr.bf16.mxu0 0
  %1580 = vmatpush1.bf16.msra.mxu0 %v1557
  %1581 = vmatprep.subr.bf16.mxu0 0
  %1582 = vmatpush1.bf16.msra.mxu0 %v1558
  %1583 = vmatprep.subr.bf16.mxu0 0
  %1584 = vmatpush1.bf16.msra.mxu0 %v1559
  %1585 = vmatprep.subr.bf16.mxu0 0
  %1586 = vmatpush1.bf16.msra.mxu0 %v1560
  %1587 = vmatprep.subr.bf16.mxu0 0
  %1588 = vmatpush1.bf16.msra.mxu0 %v1561
  %1589 = vmatprep.subr.bf16.mxu0 0
  %1590 = vmatpush1.bf16.msra.mxu0 %v1575
  %1591 = vmatprep.subr.bf16.mxu0 0
  %1592 = vmatpush1.bf16.msra.mxu0 0
  %1593 = vmatprep.subr.bf16.mxu0 0
  %1594 = vmatpush1.bf16.msra.mxu0 0
  %1595 = vmatprep.subr.bf16.mxu0 0
  %1596 = vmatpush1.bf16.msra.mxu0 0
  %1597 = vmatprep.subr.bf16.mxu0 0
  %1598 = vmatpush1.bf16.msra.mxu0 0
  %1599 = vmatprep.subr.bf16.mxu0 0
  %1600 = vmatpush1.bf16.msra.mxu0 0
  %1601 = vmatprep.subr.bf16.mxu0 0
  %1602 = vmatpush1.bf16.msra.mxu0 0
  %1603 = vmatprep.subr.bf16.mxu0 0
  %1604 = vmatpush1.bf16.msra.mxu0 0
  %1605 = vmatprep.subr.bf16.mxu0 0
  %1606 = vmatpush1.bf16.msra.mxu0 0
  %1607 = vmatprep.subr.bf16.mxu0 0
  %1608 = vmatpush1.bf16.msra.mxu0 0
  %1609 = vmatprep.mubr.bf16.mxu0 0
  %1610 = vmatmul.mubr.bf16.gmra.mrb[0].mxu0 %v1571
  %v1611 = vpop.f32.mrb[0].mxu0
  %v1612 = vadd.f32 0.0, %v1611
  %v1613 = vpop.f32.mrb[0].mxu0
  %v1614 = vpop.f32.mrb[0].mxu0
  %v1615 = vpop.f32.mrb[0].mxu0
  %1616 = vdwg.mxu0
  %v1630 = vunpack.c.l.b16 %v1501
  %v1631 = vunpack.c.l.b16 %v1502
  %v1632 = vunpack.c.l.b16 %v1503
  %v1633 = vunpack.c.l.b16 %v1504
  %v1634 = vunpack.c.l.b16 %v1505
  %v1635 = vunpack.c.l.b16 %v1506
  %v1636 = vunpack.c.l.b16 %v1507
  %v1637 = vunpack.c.l.b16 %v1508
  %v1638 = vunpack.c.l.b16 %v1509
  %v1639 = vunpack.c.l.b16 %v1510
  %v1640 = vunpack.c.l.b16 %v1511
  %v1641 = vunpack.c.l.b16 %v1512
  %v1642 = vunpack.c.l.b16 %v1513
  %v1643 = vpack.c.b16 %v1631, %v1630
  %v1644 = vpack.c.b16 %v1633, %v1632
  %v1645 = vpack.c.b16 %v1635, %v1634
  %v1646 = vpack.c.b16 %v1637, %v1636
  %v1647 = vpack.c.b16 %v1639, %v1638
  %v1648 = vpack.c.b16 %v1641, %v1640
  %v1649 = vpack.c.b16 %v1642, %v1642
  %v1657 = vsel %vm1569, %v1496, 0
  %v1660 = vsel %vm1573, %v1649, 0
  %1662 = vmatprep.subr.bf16.mxu0 0
  %1663 = vmatpush1.bf16.msra.mxu0 %v1643
  %1664 = vmatprep.subr.bf16.mxu0 0
  %1665 = vmatpush1.bf16.msra.mxu0 %v1644
  %1666 = vmatprep.subr.bf16.mxu0 0
  %1667 = vmatpush1.bf16.msra.mxu0 %v1645
  %1668 = vmatprep.subr.bf16.mxu0 0
  %1669 = vmatpush1.bf16.msra.mxu0 %v1646
  %1670 = vmatprep.subr.bf16.mxu0 0
  %1671 = vmatpush1.bf16.msra.mxu0 %v1647
  %1672 = vmatprep.subr.bf16.mxu0 0
  %1673 = vmatpush1.bf16.msra.mxu0 %v1648
  %1674 = vmatprep.subr.bf16.mxu0 0
  %1675 = vmatpush1.bf16.msra.mxu0 %v1660
  %1676 = vmatprep.subr.bf16.mxu0 0
  %1677 = vmatpush1.bf16.msra.mxu0 0
  %1678 = vmatprep.subr.bf16.mxu0 0
  %1679 = vmatpush1.bf16.msra.mxu0 0
  %1680 = vmatprep.subr.bf16.mxu0 0
  %1681 = vmatpush1.bf16.msra.mxu0 0
  %1682 = vmatprep.subr.bf16.mxu0 0
  %1683 = vmatpush1.bf16.msra.mxu0 0
  %1684 = vmatprep.subr.bf16.mxu0 0
  %1685 = vmatpush1.bf16.msra.mxu0 0
  %1686 = vmatprep.subr.bf16.mxu0 0
  %1687 = vmatpush1.bf16.msra.mxu0 0
  %1688 = vmatprep.subr.bf16.mxu0 0
  %1689 = vmatpush1.bf16.msra.mxu0 0
  %1690 = vmatprep.subr.bf16.mxu0 0
  %1691 = vmatpush1.bf16.msra.mxu0 0
  %1692 = vmatprep.subr.bf16.mxu0 0
  %1693 = vmatpush1.bf16.msra.mxu0 0
  %1694 = vmatprep.mubr.bf16.mxu0 0
  %1695 = vmatmul.mubr.bf16.gmra.mrb[0].mxu0 %v1657
  %v1696 = vpop.f32.mrb[0].mxu0
  %v1697 = vadd.f32 %v1612, %v1696
  %v1698 = vpop.f32.mrb[0].mxu0
  %v1699 = vpop.f32.mrb[0].mxu0
  %v1700 = vpop.f32.mrb[0].mxu0
  %1701 = vdwg.mxu0
  %s1702 = scalar_lea.vmem %s5, 104
  %v1703 = vld [vmem:[%s1702] sm:$0xf]
  %v1704 = vld [vmem:[%s1702 + $0x4] sm:$0xf]
  %v1705 = vld [vmem:[%s1702 + $0x8] sm:$0xf]
  %v1706 = vld [vmem:[%s1702 + $0xc] sm:$0xf]
  %v1707 = vld [vmem:[%s1702 + $0x10] sm:$0xf]
  %v1708 = vld [vmem:[%s1702 + $0x14] sm:$0xf]
  %v1709 = vld [vmem:[%s1702 + $0x18] sm:$0xf]
  %v1710 = vld [vmem:[%s1702 + $0x1c] sm:$0xf]
  %v1711 = vld [vmem:[%s1702 + $0x20] sm:$0xf]
  %v1712 = vld [vmem:[%s1702 + $0x24] sm:$0xf]
  %v1713 = vld [vmem:[%s1702 + $0x28] sm:$0xf]
  %v1714 = vld [vmem:[%s1702 + $0x2c] sm:$0xf]
  %v1715 = vld [vmem:[%s1702 + $0x30] sm:$0x3]
  %v1729 = vunpack.c.l.b16 %v1703
  %v1730 = vunpack.c.l.b16 %v1704
  %v1731 = vunpack.c.l.b16 %v1705
  %v1732 = vunpack.c.l.b16 %v1706
  %v1733 = vunpack.c.l.b16 %v1707
  %v1734 = vunpack.c.l.b16 %v1708
  %v1735 = vunpack.c.l.b16 %v1709
  %v1736 = vunpack.c.l.b16 %v1710
  %v1737 = vunpack.c.l.b16 %v1711
  %v1738 = vunpack.c.l.b16 %v1712
  %v1739 = vunpack.c.l.b16 %v1713
  %v1740 = vunpack.c.l.b16 %v1714
  %v1741 = vunpack.c.l.b16 %v1715
  %v1742 = vpack.c.b16 %v1730, %v1729
  %v1743 = vpack.c.b16 %v1732, %v1731
  %v1744 = vpack.c.b16 %v1734, %v1733
  %v1745 = vpack.c.b16 %v1736, %v1735
  %v1746 = vpack.c.b16 %v1738, %v1737
  %v1747 = vpack.c.b16 %v1740, %v1739
  %v1748 = vpack.c.b16 %v1741, %v1741
  %v1756 = vsel %vm1569, %v1497, 0
  %v1759 = vsel %vm1573, %v1748, 0
  %1761 = vmatprep.subr.bf16.mxu0 0
  %1762 = vmatpush1.bf16.msra.mxu0 %v1742
  %1763 = vmatprep.subr.bf16.mxu0 0
  %1764 = vmatpush1.bf16.msra.mxu0 %v1743
  %1765 = vmatprep.subr.bf16.mxu0 0
  %1766 = vmatpush1.bf16.msra.mxu0 %v1744
  %1767 = vmatprep.subr.bf16.mxu0 0
  %1768 = vmatpush1.bf16.msra.mxu0 %v1745
  %1769 = vmatprep.subr.bf16.mxu0 0
  %1770 = vmatpush1.bf16.msra.mxu0 %v1746
  %1771 = vmatprep.subr.bf16.mxu0 0
  %1772 = vmatpush1.bf16.msra.mxu0 %v1747
  %1773 = vmatprep.subr.bf16.mxu0 0
  %1774 = vmatpush1.bf16.msra.mxu0 %v1759
  %1775 = vmatprep.subr.bf16.mxu0 0
  %1776 = vmatpush1.bf16.msra.mxu0 0
  %1777 = vmatprep.subr.bf16.mxu0 0
  %1778 = vmatpush1.bf16.msra.mxu0 0
  %1779 = vmatprep.subr.bf16.mxu0 0
  %1780 = vmatpush1.bf16.msra.mxu0 0
  %1781 = vmatprep.subr.bf16.mxu0 0
  %1782 = vmatpush1.bf16.msra.mxu0 0
  %1783 = vmatprep.subr.bf16.mxu0 0
  %1784 = vmatpush1.bf16.msra.mxu0 0
  %1785 = vmatprep.subr.bf16.mxu0 0
  %1786 = vmatpush1.bf16.msra.mxu0 0
  %1787 = vmatprep.subr.bf16.mxu0 0
  %1788 = vmatpush1.bf16.msra.mxu0 0
  %1789 = vmatprep.subr.bf16.mxu0 0
  %1790 = vmatpush1.bf16.msra.mxu0 0
  %1791 = vmatprep.subr.bf16.mxu0 0
  %1792 = vmatpush1.bf16.msra.mxu0 0
  %1793 = vmatprep.mubr.bf16.mxu0 0
  %1794 = vmatmul.mubr.bf16.gmra.mrb[0].mxu0 %v1756
  %v1795 = vpop.f32.mrb[0].mxu0
  %v1796 = vadd.f32 0.0, %v1795
  %v1797 = vpop.f32.mrb[0].mxu0
  %v1798 = vpop.f32.mrb[0].mxu0
  %v1799 = vpop.f32.mrb[0].mxu0
  %1800 = vdwg.mxu0
  %v1801 = vadd.f32 %v1697, %v1796
  %s1802 = scalar_lea.vmem %s5, 156
  %v1803 = vld [vmem:[%s1802] sm:$0xf]
  %v1804 = vld [vmem:[%s1802 + $0x4] sm:$0xf]
  %v1805 = vld [vmem:[%s1802 + $0x8] sm:$0xf]
  %v1806 = vld [vmem:[%s1802 + $0xc] sm:$0xf]
  %v1807 = vld [vmem:[%s1802 + $0x10] sm:$0xf]
  %v1808 = vld [vmem:[%s1802 + $0x14] sm:$0xf]
  %v1809 = vld [vmem:[%s1802 + $0x18] sm:$0xf]
  %v1810 = vld [vmem:[%s1802 + $0x1c] sm:$0xf]
  %v1811 = vld [vmem:[%s1802 + $0x20] sm:$0xf]
  %v1812 = vld [vmem:[%s1802 + $0x24] sm:$0xf]
  %v1813 = vld [vmem:[%s1802 + $0x28] sm:$0xf]
  %v1814 = vld [vmem:[%s1802 + $0x2c] sm:$0xf]
  %v1815 = vld [vmem:[%s1802 + $0x30] sm:$0x3]
  %v1817 = vrot.slane %v1497, 4
  %v1831 = vunpack.c.l.b16 %v1803
  %v1832 = vunpack.c.l.b16 %v1804
  %v1833 = vunpack.c.l.b16 %v1805
  %v1834 = vunpack.c.l.b16 %v1806
  %v1835 = vunpack.c.l.b16 %v1807
  %v1836 = vunpack.c.l.b16 %v1808
  %v1837 = vunpack.c.l.b16 %v1809
  %v1838 = vunpack.c.l.b16 %v1810
  %v1839 = vunpack.c.l.b16 %v1811
  %v1840 = vunpack.c.l.b16 %v1812
  %v1841 = vunpack.c.l.b16 %v1813
  %v1842 = vunpack.c.l.b16 %v1814
  %v1843 = vunpack.c.l.b16 %v1815
  %v1844 = vpack.c.b16 %v1832, %v1831
  %v1845 = vpack.c.b16 %v1834, %v1833
  %v1846 = vpack.c.b16 %v1836, %v1835
  %v1847 = vpack.c.b16 %v1838, %v1837
  %v1848 = vpack.c.b16 %v1840, %v1839
  %v1849 = vpack.c.b16 %v1842, %v1841
  %v1850 = vpack.c.b16 %v1843, %v1843
  %v1858 = vsel %vm1569, %v1817, 0
  %v1861 = vsel %vm1573, %v1850, 0
  %1863 = vmatprep.subr.bf16.mxu0 0
  %1864 = vmatpush1.bf16.msra.mxu0 %v1844
  %1865 = vmatprep.subr.bf16.mxu0 0
  %1866 = vmatpush1.bf16.msra.mxu0 %v1845
  %1867 = vmatprep.subr.bf16.mxu0 0
  %1868 = vmatpush1.bf16.msra.mxu0 %v1846
  %1869 = vmatprep.subr.bf16.mxu0 0
  %1870 = vmatpush1.bf16.msra.mxu0 %v1847
  %1871 = vmatprep.subr.bf16.mxu0 0
  %1872 = vmatpush1.bf16.msra.mxu0 %v1848
  %1873 = vmatprep.subr.bf16.mxu0 0
  %1874 = vmatpush1.bf16.msra.mxu0 %v1849
  %1875 = vmatprep.subr.bf16.mxu0 0
  %1876 = vmatpush1.bf16.msra.mxu0 %v1861
  %1877 = vmatprep.subr.bf16.mxu0 0
  %1878 = vmatpush1.bf16.msra.mxu0 0
  %1879 = vmatprep.subr.bf16.mxu0 0
  %1880 = vmatpush1.bf16.msra.mxu0 0
  %1881 = vmatprep.subr.bf16.mxu0 0
  %1882 = vmatpush1.bf16.msra.mxu0 0
  %1883 = vmatprep.subr.bf16.mxu0 0
  %1884 = vmatpush1.bf16.msra.mxu0 0
  %1885 = vmatprep.subr.bf16.mxu0 0
  %1886 = vmatpush1.bf16.msra.mxu0 0
  %1887 = vmatprep.subr.bf16.mxu0 0
  %1888 = vmatpush1.bf16.msra.mxu0 0
  %1889 = vmatprep.subr.bf16.mxu0 0
  %1890 = vmatpush1.bf16.msra.mxu0 0
  %1891 = vmatprep.subr.bf16.mxu0 0
  %1892 = vmatpush1.bf16.msra.mxu0 0
  %1893 = vmatprep.subr.bf16.mxu0 0
  %1894 = vmatpush1.bf16.msra.mxu0 0
  %1895 = vmatprep.mubr.bf16.mxu0 0
  %1896 = vmatmul.mubr.bf16.gmra.mrb[0].mxu0 %v1858
  %v1897 = vpop.f32.mrb[0].mxu0
  %v1898 = vadd.f32 0.0, %v1897
  %v1899 = vpop.f32.mrb[0].mxu0
  %v1900 = vpop.f32.mrb[0].mxu0
  %v1901 = vpop.f32.mrb[0].mxu0
  %1902 = vdwg.mxu0
  %v1903 = vadd.f32 %v1801, %v1898
  %s1904 = scalar_lea.vmem %s5, 208
  %v1905 = vld [vmem:[%s1904] sm:$0xf]
  %v1906 = vld [vmem:[%s1904 + $0x4] sm:$0xf]
  %v1907 = vld [vmem:[%s1904 + $0x8] sm:$0xf]
  %v1908 = vld [vmem:[%s1904 + $0xc] sm:$0xf]
  %v1909 = vld [vmem:[%s1904 + $0x10] sm:$0xf]
  %v1910 = vld [vmem:[%s1904 + $0x14] sm:$0xf]
  %v1911 = vld [vmem:[%s1904 + $0x18] sm:$0xf]
  %v1912 = vld [vmem:[%s1904 + $0x1c] sm:$0xf]
  %v1913 = vld [vmem:[%s1904 + $0x20] sm:$0xf]
  %v1914 = vld [vmem:[%s1904 + $0x24] sm:$0xf]
  %v1915 = vld [vmem:[%s1904 + $0x28] sm:$0xf]
  %v1916 = vld [vmem:[%s1904 + $0x2c] sm:$0xf]
  %v1917 = vld [vmem:[%s1904 + $0x30] sm:$0x3]
  %v1931 = vunpack.c.l.b16 %v1905
  %v1932 = vunpack.c.l.b16 %v1906
  %v1933 = vunpack.c.l.b16 %v1907
  %v1934 = vunpack.c.l.b16 %v1908
  %v1935 = vunpack.c.l.b16 %v1909
  %v1936 = vunpack.c.l.b16 %v1910
  %v1937 = vunpack.c.l.b16 %v1911
  %v1938 = vunpack.c.l.b16 %v1912
  %v1939 = vunpack.c.l.b16 %v1913
  %v1940 = vunpack.c.l.b16 %v1914
  %v1941 = vunpack.c.l.b16 %v1915
  %v1942 = vunpack.c.l.b16 %v1916
  %v1943 = vunpack.c.l.b16 %v1917
  %v1944 = vpack.c.b16 %v1932, %v1931
  %v1945 = vpack.c.b16 %v1934, %v1933
  %v1946 = vpack.c.b16 %v1936, %v1935
  %v1947 = vpack.c.b16 %v1938, %v1937
  %v1948 = vpack.c.b16 %v1940, %v1939
  %v1949 = vpack.c.b16 %v1942, %v1941
  %v1950 = vpack.c.b16 %v1943, %v1943
  %v1958 = vsel %vm1569, %v1498, 0
  %v1961 = vsel %vm1573, %v1950, 0
  %1963 = vmatprep.subr.bf16.mxu0 0
  %1964 = vmatpush1.bf16.msra.mxu0 %v1944
  %1965 = vmatprep.subr.bf16.mxu0 0
  %1966 = vmatpush1.bf16.msra.mxu0 %v1945
  %1967 = vmatprep.subr.bf16.mxu0 0
  %1968 = vmatpush1.bf16.msra.mxu0 %v1946
  %1969 = vmatprep.subr.bf16.mxu0 0
  %1970 = vmatpush1.bf16.msra.mxu0 %v1947
  %1971 = vmatprep.subr.bf16.mxu0 0
  %1972 = vmatpush1.bf16.msra.mxu0 %v1948
  %1973 = vmatprep.subr.bf16.mxu0 0
  %1974 = vmatpush1.bf16.msra.mxu0 %v1949
  %1975 = vmatprep.subr.bf16.mxu0 0
  %1976 = vmatpush1.bf16.msra.mxu0 %v1961
  %1977 = vmatprep.subr.bf16.mxu0 0
  %1978 = vmatpush1.bf16.msra.mxu0 0
  %1979 = vmatprep.subr.bf16.mxu0 0
  %1980 = vmatpush1.bf16.msra.mxu0 0
  %1981 = vmatprep.subr.bf16.mxu0 0
  %1982 = vmatpush1.bf16.msra.mxu0 0
  %1983 = vmatprep.subr.bf16.mxu0 0
  %1984 = vmatpush1.bf16.msra.mxu0 0
  %1985 = vmatprep.subr.bf16.mxu0 0
  %1986 = vmatpush1.bf16.msra.mxu0 0
  %1987 = vmatprep.subr.bf16.mxu0 0
  %1988 = vmatpush1.bf16.msra.mxu0 0
  %1989 = vmatprep.subr.bf16.mxu0 0
  %1990 = vmatpush1.bf16.msra.mxu0 0
  %1991 = vmatprep.subr.bf16.mxu0 0
  %1992 = vmatpush1.bf16.msra.mxu0 0
  %1993 = vmatprep.subr.bf16.mxu0 0
  %1994 = vmatpush1.bf16.msra.mxu0 0
  %1995 = vmatprep.mubr.bf16.mxu0 0
  %1996 = vmatmul.mubr.bf16.gmra.mrb[0].mxu0 %v1958
  %v1997 = vpop.f32.mrb[0].mxu0
  %v1998 = vadd.f32 0.0, %v1997
  %v1999 = vpop.f32.mrb[0].mxu0
  %v2000 = vpop.f32.mrb[0].mxu0
  %v2001 = vpop.f32.mrb[0].mxu0
  %2002 = vdwg.mxu0
  %v2003 = vadd.f32 %v1903, %v1998
  %s2004 = scalar_lea.vmem %s5, 260
  %v2005 = vld [vmem:[%s2004] sm:$0xf]
  %v2006 = vld [vmem:[%s2004 + $0x4] sm:$0xf]
  %v2007 = vld [vmem:[%s2004 + $0x8] sm:$0xf]
  %v2008 = vld [vmem:[%s2004 + $0xc] sm:$0xf]
  %v2009 = vld [vmem:[%s2004 + $0x10] sm:$0xf]
  %v2010 = vld [vmem:[%s2004 + $0x14] sm:$0xf]
  %v2011 = vld [vmem:[%s2004 + $0x18] sm:$0xf]
  %v2012 = vld [vmem:[%s2004 + $0x1c] sm:$0xf]
  %v2013 = vld [vmem:[%s2004 + $0x20] sm:$0xf]
  %v2014 = vld [vmem:[%s2004 + $0x24] sm:$0xf]
  %v2015 = vld [vmem:[%s2004 + $0x28] sm:$0xf]
  %v2016 = vld [vmem:[%s2004 + $0x2c] sm:$0xf]
  %v2017 = vld [vmem:[%s2004 + $0x30] sm:$0x3]
  %v2019 = vrot.slane %v1498, 4
  %v2033 = vunpack.c.l.b16 %v2005
  %v2034 = vunpack.c.l.b16 %v2006
  %v2035 = vunpack.c.l.b16 %v2007
  %v2036 = vunpack.c.l.b16 %v2008
  %v2037 = vunpack.c.l.b16 %v2009
  %v2038 = vunpack.c.l.b16 %v2010
  %v2039 = vunpack.c.l.b16 %v2011
  %v2040 = vunpack.c.l.b16 %v2012
  %v2041 = vunpack.c.l.b16 %v2013
  %v2042 = vunpack.c.l.b16 %v2014
  %v2043 = vunpack.c.l.b16 %v2015
  %v2044 = vunpack.c.l.b16 %v2016
  %v2045 = vunpack.c.l.b16 %v2017
  %v2046 = vpack.c.b16 %v2034, %v2033
  %v2047 = vpack.c.b16 %v2036, %v2035
  %v2048 = vpack.c.b16 %v2038, %v2037
  %v2049 = vpack.c.b16 %v2040, %v2039
  %v2050 = vpack.c.b16 %v2042, %v2041
  %v2051 = vpack.c.b16 %v2044, %v2043
  %v2052 = vpack.c.b16 %v2045, %v2045
  %v2060 = vsel %vm1569, %v2019, 0
  %v2063 = vsel %vm1573, %v2052, 0
  %2065 = vmatprep.subr.bf16.mxu0 0
  %2066 = vmatpush1.bf16.msra.mxu0 %v2046
  %2067 = vmatprep.subr.bf16.mxu0 0
  %2068 = vmatpush1.bf16.msra.mxu0 %v2047
  %2069 = vmatprep.subr.bf16.mxu0 0
  %2070 = vmatpush1.bf16.msra.mxu0 %v2048
  %2071 = vmatprep.subr.bf16.mxu0 0
  %2072 = vmatpush1.bf16.msra.mxu0 %v2049
  %2073 = vmatprep.subr.bf16.mxu0 0
  %2074 = vmatpush1.bf16.msra.mxu0 %v2050
  %2075 = vmatprep.subr.bf16.mxu0 0
  %2076 = vmatpush1.bf16.msra.mxu0 %v2051
  %2077 = vmatprep.subr.bf16.mxu0 0
  %2078 = vmatpush1.bf16.msra.mxu0 %v2063
  %2079 = vmatprep.subr.bf16.mxu0 0
  %2080 = vmatpush1.bf16.msra.mxu0 0
  %2081 = vmatprep.subr.bf16.mxu0 0
  %2082 = vmatpush1.bf16.msra.mxu0 0
  %2083 = vmatprep.subr.bf16.mxu0 0
  %2084 = vmatpush1.bf16.msra.mxu0 0
  %2085 = vmatprep.subr.bf16.mxu0 0
  %2086 = vmatpush1.bf16.msra.mxu0 0
  %2087 = vmatprep.subr.bf16.mxu0 0
  %2088 = vmatpush1.bf16.msra.mxu0 0
  %2089 = vmatprep.subr.bf16.mxu0 0
  %2090 = vmatpush1.bf16.msra.mxu0 0
  %2091 = vmatprep.subr.bf16.mxu0 0
  %2092 = vmatpush1.bf16.msra.mxu0 0
  %2093 = vmatprep.subr.bf16.mxu0 0
  %2094 = vmatpush1.bf16.msra.mxu0 0
  %2095 = vmatprep.subr.bf16.mxu0 0
  %2096 = vmatpush1.bf16.msra.mxu0 0
  %2097 = vmatprep.mubr.bf16.mxu0 0
  %2098 = vmatmul.mubr.bf16.gmra.mrb[0].mxu0 %v2060
  %v2099 = vpop.f32.mrb[0].mxu0
  %v2100 = vadd.f32 0.0, %v2099
  %v2101 = vpop.f32.mrb[0].mxu0
  %v2102 = vpop.f32.mrb[0].mxu0
  %v2103 = vpop.f32.mrb[0].mxu0
  %2104 = vdwg.mxu0
  %v2105 = vadd.f32 %v2003, %v2100
  %s2106 = scalar_lea.vmem %s5, 312
  %v2107 = vld [vmem:[%s2106] sm:$0xf]
  %v2108 = vld [vmem:[%s2106 + $0x4] sm:$0xf]
  %v2109 = vld [vmem:[%s2106 + $0x8] sm:$0xf]
  %v2110 = vld [vmem:[%s2106 + $0xc] sm:$0xf]
  %v2111 = vld [vmem:[%s2106 + $0x10] sm:$0xf]
  %v2112 = vld [vmem:[%s2106 + $0x14] sm:$0xf]
  %v2113 = vld [vmem:[%s2106 + $0x18] sm:$0xf]
  %v2114 = vld [vmem:[%s2106 + $0x1c] sm:$0xf]
  %v2115 = vld [vmem:[%s2106 + $0x20] sm:$0xf]
  %v2116 = vld [vmem:[%s2106 + $0x24] sm:$0xf]
  %v2117 = vld [vmem:[%s2106 + $0x28] sm:$0xf]
  %v2118 = vld [vmem:[%s2106 + $0x2c] sm:$0xf]
  %v2119 = vld [vmem:[%s2106 + $0x30] sm:$0x3]
  %v2133 = vunpack.c.l.b16 %v2107
  %v2134 = vunpack.c.l.b16 %v2108
  %v2135 = vunpack.c.l.b16 %v2109
  %v2136 = vunpack.c.l.b16 %v2110
  %v2137 = vunpack.c.l.b16 %v2111
  %v2138 = vunpack.c.l.b16 %v2112
  %v2139 = vunpack.c.l.b16 %v2113
  %v2140 = vunpack.c.l.b16 %v2114
  %v2141 = vunpack.c.l.b16 %v2115
  %v2142 = vunpack.c.l.b16 %v2116
  %v2143 = vunpack.c.l.b16 %v2117
  %v2144 = vunpack.c.l.b16 %v2118
  %v2145 = vunpack.c.l.b16 %v2119
  %v2146 = vpack.c.b16 %v2134, %v2133
  %v2147 = vpack.c.b16 %v2136, %v2135
  %v2148 = vpack.c.b16 %v2138, %v2137
  %v2149 = vpack.c.b16 %v2140, %v2139
  %v2150 = vpack.c.b16 %v2142, %v2141
  %v2151 = vpack.c.b16 %v2144, %v2143
  %v2152 = vpack.c.b16 %v2145, %v2145
  %v2160 = vsel %vm1569, %v1499, 0
  %v2163 = vsel %vm1573, %v2152, 0
  %2165 = vmatprep.subr.bf16.mxu0 0
  %2166 = vmatpush1.bf16.msra.mxu0 %v2146
  %2167 = vmatprep.subr.bf16.mxu0 0
  %2168 = vmatpush1.bf16.msra.mxu0 %v2147
  %2169 = vmatprep.subr.bf16.mxu0 0
  %2170 = vmatpush1.bf16.msra.mxu0 %v2148
  %2171 = vmatprep.subr.bf16.mxu0 0
  %2172 = vmatpush1.bf16.msra.mxu0 %v2149
  %2173 = vmatprep.subr.bf16.mxu0 0
  %2174 = vmatpush1.bf16.msra.mxu0 %v2150
  %2175 = vmatprep.subr.bf16.mxu0 0
  %2176 = vmatpush1.bf16.msra.mxu0 %v2151
  %2177 = vmatprep.subr.bf16.mxu0 0
  %2178 = vmatpush1.bf16.msra.mxu0 %v2163
  %2179 = vmatprep.subr.bf16.mxu0 0
  %2180 = vmatpush1.bf16.msra.mxu0 0
  %2181 = vmatprep.subr.bf16.mxu0 0
  %2182 = vmatpush1.bf16.msra.mxu0 0
  %2183 = vmatprep.subr.bf16.mxu0 0
  %2184 = vmatpush1.bf16.msra.mxu0 0
  %2185 = vmatprep.subr.bf16.mxu0 0
  %2186 = vmatpush1.bf16.msra.mxu0 0
  %2187 = vmatprep.subr.bf16.mxu0 0
  %2188 = vmatpush1.bf16.msra.mxu0 0
  %2189 = vmatprep.subr.bf16.mxu0 0
  %2190 = vmatpush1.bf16.msra.mxu0 0
  %2191 = vmatprep.subr.bf16.mxu0 0
  %2192 = vmatpush1.bf16.msra.mxu0 0
  %2193 = vmatprep.subr.bf16.mxu0 0
  %2194 = vmatpush1.bf16.msra.mxu0 0
  %2195 = vmatprep.subr.bf16.mxu0 0
  %2196 = vmatpush1.bf16.msra.mxu0 0
  %2197 = vmatprep.mubr.bf16.mxu0 0
  %2198 = vmatmul.mubr.bf16.gmra.mrb[0].mxu0 %v2160
  %v2199 = vpop.f32.mrb[0].mxu0
  %v2200 = vadd.f32 0.0, %v2199
  %v2201 = vpop.f32.mrb[0].mxu0
  %v2202 = vpop.f32.mrb[0].mxu0
  %v2203 = vpop.f32.mrb[0].mxu0
  %2204 = vdwg.mxu0
  %v2205 = vadd.f32 %v2105, %v2200
  %s2206 = scalar_lea.vmem %s5, 364
  %v2207 = vld [vmem:[%s2206] sm:$0xf]
  %v2208 = vld [vmem:[%s2206 + $0x4] sm:$0xf]
  %v2209 = vld [vmem:[%s2206 + $0x8] sm:$0xf]
  %v2210 = vld [vmem:[%s2206 + $0xc] sm:$0xf]
  %v2211 = vld [vmem:[%s2206 + $0x10] sm:$0xf]
  %v2212 = vld [vmem:[%s2206 + $0x14] sm:$0xf]
  %v2213 = vld [vmem:[%s2206 + $0x18] sm:$0xf]
  %v2214 = vld [vmem:[%s2206 + $0x1c] sm:$0xf]
  %v2215 = vld [vmem:[%s2206 + $0x20] sm:$0xf]
  %v2216 = vld [vmem:[%s2206 + $0x24] sm:$0xf]
  %v2217 = vld [vmem:[%s2206 + $0x28] sm:$0xf]
  %v2218 = vld [vmem:[%s2206 + $0x2c] sm:$0xf]
  %v2219 = vld [vmem:[%s2206 + $0x30] sm:$0x3]
  %v2221 = vrot.slane %v1499, 4
  %v2235 = vunpack.c.l.b16 %v2207
  %v2236 = vunpack.c.l.b16 %v2208
  %v2237 = vunpack.c.l.b16 %v2209
  %v2238 = vunpack.c.l.b16 %v2210
  %v2239 = vunpack.c.l.b16 %v2211
  %v2240 = vunpack.c.l.b16 %v2212
  %v2241 = vunpack.c.l.b16 %v2213
  %v2242 = vunpack.c.l.b16 %v2214
  %v2243 = vunpack.c.l.b16 %v2215
  %v2244 = vunpack.c.l.b16 %v2216
  %v2245 = vunpack.c.l.b16 %v2217
  %v2246 = vunpack.c.l.b16 %v2218
  %v2247 = vunpack.c.l.b16 %v2219
  %v2248 = vpack.c.b16 %v2236, %v2235
  %v2249 = vpack.c.b16 %v2238, %v2237
  %v2250 = vpack.c.b16 %v2240, %v2239
  %v2251 = vpack.c.b16 %v2242, %v2241
  %v2252 = vpack.c.b16 %v2244, %v2243
  %v2253 = vpack.c.b16 %v2246, %v2245
  %v2254 = vpack.c.b16 %v2247, %v2247
  %v2262 = vsel %vm1569, %v2221, 0
  %v2265 = vsel %vm1573, %v2254, 0
  %2267 = vmatprep.subr.bf16.mxu0 0
  %2268 = vmatpush1.bf16.msra.mxu0 %v2248
  %2269 = vmatprep.subr.bf16.mxu0 0
  %2270 = vmatpush1.bf16.msra.mxu0 %v2249
  %2271 = vmatprep.subr.bf16.mxu0 0
  %2272 = vmatpush1.bf16.msra.mxu0 %v2250
  %2273 = vmatprep.subr.bf16.mxu0 0
  %2274 = vmatpush1.bf16.msra.mxu0 %v2251
  %2275 = vmatprep.subr.bf16.mxu0 0
  %2276 = vmatpush1.bf16.msra.mxu0 %v2252
  %2277 = vmatprep.subr.bf16.mxu0 0
  %2278 = vmatpush1.bf16.msra.mxu0 %v2253
  %2279 = vmatprep.subr.bf16.mxu0 0
  %2280 = vmatpush1.bf16.msra.mxu0 %v2265
  %2281 = vmatprep.subr.bf16.mxu0 0
  %2282 = vmatpush1.bf16.msra.mxu0 0
  %2283 = vmatprep.subr.bf16.mxu0 0
  %2284 = vmatpush1.bf16.msra.mxu0 0
  %2285 = vmatprep.subr.bf16.mxu0 0
  %2286 = vmatpush1.bf16.msra.mxu0 0
  %2287 = vmatprep.subr.bf16.mxu0 0
  %2288 = vmatpush1.bf16.msra.mxu0 0
  %2289 = vmatprep.subr.bf16.mxu0 0
  %2290 = vmatpush1.bf16.msra.mxu0 0
  %2291 = vmatprep.subr.bf16.mxu0 0
  %2292 = vmatpush1.bf16.msra.mxu0 0
  %2293 = vmatprep.subr.bf16.mxu0 0
  %2294 = vmatpush1.bf16.msra.mxu0 0
  %2295 = vmatprep.subr.bf16.mxu0 0
  %2296 = vmatpush1.bf16.msra.mxu0 0
  %2297 = vmatprep.subr.bf16.mxu0 0
  %2298 = vmatpush1.bf16.msra.mxu0 0
  %2299 = vmatprep.mubr.bf16.mxu0 0
  %2300 = vmatmul.mubr.bf16.gmra.mrb[0].mxu0 %v2262
  %v2301 = vpop.f32.mrb[0].mxu0
  %v2302 = vadd.f32 0.0, %v2301
  %v2303 = vpop.f32.mrb[0].mxu0
  %v2304 = vpop.f32.mrb[0].mxu0
  %v2305 = vpop.f32.mrb[0].mxu0
  %2306 = vdwg.mxu0
  %v2307 = vadd.f32 %v2205, %v2302
  %s2308 = scalar_lea.vmem %s5, 416
  %v2309 = vld [vmem:[%s2308] sm:$0xf]
  %v2310 = vld [vmem:[%s2308 + $0x4] sm:$0xf]
  %v2311 = vld [vmem:[%s2308 + $0x8] sm:$0xf]
  %v2312 = vld [vmem:[%s2308 + $0xc] sm:$0xf]
  %v2313 = vld [vmem:[%s2308 + $0x10] sm:$0xf]
  %v2314 = vld [vmem:[%s2308 + $0x14] sm:$0xf]
  %v2315 = vld [vmem:[%s2308 + $0x18] sm:$0xf]
  %v2316 = vld [vmem:[%s2308 + $0x1c] sm:$0xf]
  %v2317 = vld [vmem:[%s2308 + $0x20] sm:$0xf]
  %v2318 = vld [vmem:[%s2308 + $0x24] sm:$0xf]
  %v2319 = vld [vmem:[%s2308 + $0x28] sm:$0xf]
  %v2320 = vld [vmem:[%s2308 + $0x2c] sm:$0xf]
  %v2321 = vld [vmem:[%s2308 + $0x30] sm:$0x3]
  %v2335 = vunpack.c.l.b16 %v2309
  %v2336 = vunpack.c.l.b16 %v2310
  %v2337 = vunpack.c.l.b16 %v2311
  %v2338 = vunpack.c.l.b16 %v2312
  %v2339 = vunpack.c.l.b16 %v2313
  %v2340 = vunpack.c.l.b16 %v2314
  %v2341 = vunpack.c.l.b16 %v2315
  %v2342 = vunpack.c.l.b16 %v2316
  %v2343 = vunpack.c.l.b16 %v2317
  %v2344 = vunpack.c.l.b16 %v2318
  %v2345 = vunpack.c.l.b16 %v2319
  %v2346 = vunpack.c.l.b16 %v2320
  %v2347 = vunpack.c.l.b16 %v2321
  %v2348 = vpack.c.b16 %v2336, %v2335
  %v2349 = vpack.c.b16 %v2338, %v2337
  %v2350 = vpack.c.b16 %v2340, %v2339
  %v2351 = vpack.c.b16 %v2342, %v2341
  %v2352 = vpack.c.b16 %v2344, %v2343
  %v2353 = vpack.c.b16 %v2346, %v2345
  %v2354 = vpack.c.b16 %v2347, %v2347
  %v2362 = vsel %vm1569, %v1500, 0
  %v2365 = vsel %vm1573, %v2354, 0
  %2367 = vmatprep.subr.bf16.mxu0 0
  %2368 = vmatpush1.bf16.msra.mxu0 %v2348
  %2369 = vmatprep.subr.bf16.mxu0 0
  %2370 = vmatpush1.bf16.msra.mxu0 %v2349
  %2371 = vmatprep.subr.bf16.mxu0 0
  %2372 = vmatpush1.bf16.msra.mxu0 %v2350
  %2373 = vmatprep.subr.bf16.mxu0 0
  %2374 = vmatpush1.bf16.msra.mxu0 %v2351
  %2375 = vmatprep.subr.bf16.mxu0 0
  %2376 = vmatpush1.bf16.msra.mxu0 %v2352
  %2377 = vmatprep.subr.bf16.mxu0 0
  %2378 = vmatpush1.bf16.msra.mxu0 %v2353
  %2379 = vmatprep.subr.bf16.mxu0 0
  %2380 = vmatpush1.bf16.msra.mxu0 %v2365
  %2381 = vmatprep.subr.bf16.mxu0 0
  %2382 = vmatpush1.bf16.msra.mxu0 0
  %2383 = vmatprep.subr.bf16.mxu0 0
  %2384 = vmatpush1.bf16.msra.mxu0 0
  %2385 = vmatprep.subr.bf16.mxu0 0
  %2386 = vmatpush1.bf16.msra.mxu0 0
  %2387 = vmatprep.subr.bf16.mxu0 0
  %2388 = vmatpush1.bf16.msra.mxu0 0
  %2389 = vmatprep.subr.bf16.mxu0 0
  %2390 = vmatpush1.bf16.msra.mxu0 0
  %2391 = vmatprep.subr.bf16.mxu0 0
  %2392 = vmatpush1.bf16.msra.mxu0 0
  %2393 = vmatprep.subr.bf16.mxu0 0
  %2394 = vmatpush1.bf16.msra.mxu0 0
  %2395 = vmatprep.subr.bf16.mxu0 0
  %2396 = vmatpush1.bf16.msra.mxu0 0
  %2397 = vmatprep.subr.bf16.mxu0 0
  %2398 = vmatpush1.bf16.msra.mxu0 0
  %2399 = vmatprep.mubr.bf16.mxu0 0
  %2400 = vmatmul.mubr.bf16.gmra.mrb[0].mxu0 %v2362
  %v2401 = vpop.f32.mrb[0].mxu0
  %v2402 = vadd.f32 0.0, %v2401
  %v2403 = vpop.f32.mrb[0].mxu0
  %v2404 = vpop.f32.mrb[0].mxu0
  %v2405 = vpop.f32.mrb[0].mxu0
  %2406 = vdwg.mxu0
  %v2407 = vadd.f32 %v2307, %v2402
  %s2408 = scalar_lea.vmem %s5, 468
  %v2409 = vld [vmem:[%s2408] sm:$0xf]
  %v2410 = vld [vmem:[%s2408 + $0x4] sm:$0xf]
  %v2411 = vld [vmem:[%s2408 + $0x8] sm:$0xf]
  %v2412 = vld [vmem:[%s2408 + $0xc] sm:$0xf]
  %v2413 = vld [vmem:[%s2408 + $0x10] sm:$0xf]
  %v2414 = vld [vmem:[%s2408 + $0x14] sm:$0xf]
  %v2415 = vld [vmem:[%s2408 + $0x18] sm:$0xf]
  %v2416 = vld [vmem:[%s2408 + $0x1c] sm:$0xf]
  %v2417 = vld [vmem:[%s2408 + $0x20] sm:$0xf]
  %v2418 = vld [vmem:[%s2408 + $0x24] sm:$0xf]
  %v2419 = vld [vmem:[%s2408 + $0x28] sm:$0xf]
  %v2420 = vld [vmem:[%s2408 + $0x2c] sm:$0xf]
  %v2421 = vld [vmem:[%s2408 + $0x30] sm:$0x3]
  %v2423 = vrot.slane %v1500, 4
  %v2437 = vunpack.c.l.b16 %v2409
  %v2438 = vunpack.c.l.b16 %v2410
  %v2439 = vunpack.c.l.b16 %v2411
  %v2440 = vunpack.c.l.b16 %v2412
  %v2441 = vunpack.c.l.b16 %v2413
  %v2442 = vunpack.c.l.b16 %v2414
  %v2443 = vunpack.c.l.b16 %v2415
  %v2444 = vunpack.c.l.b16 %v2416
  %v2445 = vunpack.c.l.b16 %v2417
  %v2446 = vunpack.c.l.b16 %v2418
  %v2447 = vunpack.c.l.b16 %v2419
  %v2448 = vunpack.c.l.b16 %v2420
  %v2449 = vunpack.c.l.b16 %v2421
  %v2450 = vpack.c.b16 %v2438, %v2437
  %v2451 = vpack.c.b16 %v2440, %v2439
  %v2452 = vpack.c.b16 %v2442, %v2441
  %v2453 = vpack.c.b16 %v2444, %v2443
  %v2454 = vpack.c.b16 %v2446, %v2445
  %v2455 = vpack.c.b16 %v2448, %v2447
  %v2456 = vpack.c.b16 %v2449, %v2449
  %v2464 = vsel %vm1569, %v2423, 0
  %v2467 = vsel %vm1573, %v2456, 0
  %2469 = vmatprep.subr.bf16.mxu0 0
  %2470 = vmatpush1.bf16.msra.mxu0 %v2450
  %2471 = vmatprep.subr.bf16.mxu0 0
  %2472 = vmatpush1.bf16.msra.mxu0 %v2451
  %2473 = vmatprep.subr.bf16.mxu0 0
  %2474 = vmatpush1.bf16.msra.mxu0 %v2452
  %2475 = vmatprep.subr.bf16.mxu0 0
  %2476 = vmatpush1.bf16.msra.mxu0 %v2453
  %2477 = vmatprep.subr.bf16.mxu0 0
  %2478 = vmatpush1.bf16.msra.mxu0 %v2454
  %2479 = vmatprep.subr.bf16.mxu0 0
  %2480 = vmatpush1.bf16.msra.mxu0 %v2455
  %2481 = vmatprep.subr.bf16.mxu0 0
  %2482 = vmatpush1.bf16.msra.mxu0 %v2467
  %2483 = vmatprep.subr.bf16.mxu0 0
  %2484 = vmatpush1.bf16.msra.mxu0 0
  %2485 = vmatprep.subr.bf16.mxu0 0
  %2486 = vmatpush1.bf16.msra.mxu0 0
  %2487 = vmatprep.subr.bf16.mxu0 0
  %2488 = vmatpush1.bf16.msra.mxu0 0
  %2489 = vmatprep.subr.bf16.mxu0 0
  %2490 = vmatpush1.bf16.msra.mxu0 0
  %2491 = vmatprep.subr.bf16.mxu0 0
  %2492 = vmatpush1.bf16.msra.mxu0 0
  %2493 = vmatprep.subr.bf16.mxu0 0
  %2494 = vmatpush1.bf16.msra.mxu0 0
  %2495 = vmatprep.subr.bf16.mxu0 0
  %2496 = vmatpush1.bf16.msra.mxu0 0
  %2497 = vmatprep.subr.bf16.mxu0 0
  %2498 = vmatpush1.bf16.msra.mxu0 0
  %2499 = vmatprep.subr.bf16.mxu0 0
  %2500 = vmatpush1.bf16.msra.mxu0 0
  %2501 = vmatprep.mubr.bf16.mxu0 0
  %2502 = vmatmul.mubr.bf16.gmra.mrb[0].mxu0 %v2464
  %v2503 = vpop.f32.mrb[0].mxu0
  %v2504 = vadd.f32 0.0, %v2503
  %v2505 = vpop.f32.mrb[0].mxu0
  %v2506 = vpop.f32.mrb[0].mxu0
  %v2507 = vpop.f32.mrb[0].mxu0
  %2508 = vdwg.mxu0
  %v2509 = vadd.f32 %v2407, %v2504
  %v2510 = vld [vmem:[%s6] sm:$0x1]
  %v2512 = vlaneseq
  %v2513 = vshrl.u32 %v2512, 7
  %v2514 = vsub.s32 0, %v2513
  %v2515 = vrot.slane %v2510, %v2514
  %v2517 = vadd.f32 %v2509, %v2515
  %v2518 = vsub.f32 0.0, %v2517
  %v2519 = vmul.f32 %v2518, 1.442695
  %v2520 = vpow.pop %v2519
  %v2521 = vadd.f32 %v2520, 1.0
  %v2522 = vrcp.pop %v2521
  %v2523 = vmul.f32 1.0, %v2522
  %v2524 = vld [vmem:[%s7] sm:$0xff]
  %v2525 = vld [vmem:[%s7 + $0x8] sm:$0xff]
  %v2526 = vld [vmem:[%s7 + $0x10] sm:$0xff]
  %v2527 = vld [vmem:[%s7 + $0x18] sm:$0xff]
  %v2528 = vld [vmem:[%s7 + $0x20] sm:$0xff]
  %v2529 = vld [vmem:[%s7 + $0x28] sm:$0xff]
  %v2530 = vld [vmem:[%s7 + $0x30] sm:$0xff]
  %v2531 = vld [vmem:[%s7 + $0x38] sm:$0xff]
  %v2532 = vld [vmem:[%s7 + $0x40] sm:$0xff]
  %v2533 = vld [vmem:[%s7 + $0x48] sm:$0xff]
  %v2534 = vld [vmem:[%s7 + $0x50] sm:$0xff]
  %v2535 = vld [vmem:[%s7 + $0x58] sm:$0xff]
  %v2536 = vld [vmem:[%s7 + $0x60] sm:$0xf]
  %v2537 = vld [vmem:[%s8] sm:$0x1]
  %v2539 = vlaneseq
  %v2540 = vshrl.u32 %v2539, 7
  %v2541 = vsub.s32 0, %v2540
  %v2542 = vrot.slane %v2537, %v2541
  %v2545 = vsel %vm1569, %v2523, 0
  %vm2547 = vcmask 1043456
  %v2549 = vsel %vm2547, %v2536, 0
  %2551 = vmatprep.subr.mxu0 0.0
  %2552 = vmatpush1.msra.mxu0 %v2524
  %2553 = vmatprep.subr.mxu0 0.0
  %2554 = vmatpush1.msra.mxu0 %v2525
  %2555 = vmatprep.subr.mxu0 0.0
  %2556 = vmatpush1.msra.mxu0 %v2526
  %2557 = vmatprep.subr.mxu0 0.0
  %2558 = vmatpush1.msra.mxu0 %v2527
  %2559 = vmatprep.subr.mxu0 0.0
  %2560 = vmatpush1.msra.mxu0 %v2528
  %2561 = vmatprep.subr.mxu0 0.0
  %2562 = vmatpush1.msra.mxu0 %v2529
  %2563 = vmatprep.subr.mxu0 0.0
  %2564 = vmatpush1.msra.mxu0 %v2530
  %2565 = vmatprep.subr.mxu0 0.0
  %2566 = vmatpush1.msra.mxu0 %v2531
  %2567 = vmatprep.subr.mxu0 0.0
  %2568 = vmatpush1.msra.mxu0 %v2532
  %2569 = vmatprep.subr.mxu0 0.0
  %2570 = vmatpush1.msra.mxu0 %v2533
  %2571 = vmatprep.subr.mxu0 0.0
  %2572 = vmatpush1.msra.mxu0 %v2534
  %2573 = vmatprep.subr.mxu0 0.0
  %2574 = vmatpush1.msra.mxu0 %v2535
  %2575 = vmatprep.subr.mxu0 0.0
  %2576 = vmatpush1.msra.mxu0 %v2549
  %2577 = vmatprep.subr.mxu0 0.0
  %2578 = vmatpush1.msra.mxu0 0.0
  %2579 = vmatprep.subr.mxu0 0.0
  %2580 = vmatpush1.msra.mxu0 0.0
  %2581 = vmatprep.subr.mxu0 0.0
  %2582 = vmatpush1.msra.mxu0 0.0
  %2583 = vmatprep.subr.mxu0 0.0
  %2584 = vmatpush1.msra.mxu0 0.0
  %2585 = vmatprep.subr.mxu0 0.0
  %2586 = vmatpush1.msra.mxu0 0.0
  %2587 = vmatprep.subr.mxu0 0.0
  %2588 = vmatpush1.msra.mxu0 0.0
  %2589 = vmatprep.subr.mxu0 0.0
  %2590 = vmatpush1.msra.mxu0 0.0
  %2591 = vmatprep.subr.mxu0 0.0
  %2592 = vmatpush1.msra.mxu0 0.0
  %2593 = vmatprep.subr.mxu0 0.0
  %2594 = vmatpush1.msra.mxu0 0.0
  %2595 = vmatprep.subr.mxu0 0.0
  %2596 = vmatpush1.msra.mxu0 0.0
  %2597 = vmatprep.subr.mxu0 0.0
  %2598 = vmatpush1.msra.mxu0 0.0
  %2599 = vmatprep.subr.mxu0 0.0
  %2600 = vmatpush1.msra.mxu0 0.0
  %2601 = vmatprep.subr.mxu0 0.0
  %2602 = vmatpush1.msra.mxu0 0.0
  %2603 = vmatprep.subr.mxu0 0.0
  %2604 = vmatpush1.msra.mxu0 0.0
  %2605 = vmatprep.subr.mxu0 0.0
  %2606 = vmatpush1.msra.mxu0 0.0
  %2607 = vmatprep.subr.mxu0 0.0
  %2608 = vmatpush1.msra.mxu0 0.0
  %2609 = vmatprep.subr.mxu0 0.0
  %2610 = vmatpush1.msra.mxu0 0.0
  %2611 = vmatprep.subr.mxu0 0.0
  %2612 = vmatpush1.msra.mxu0 0.0
  %2613 = vmatprep.subr.mxu0 0.0
  %2614 = vmatpush1.msra.mxu0 0.0
  %2615 = vmatprep.mubr.f32.mxu0 0.0
  %2616 = vmatmul.mubr.f32.gmra.mrb[0].mxu0 %v2545
  %v2617 = vpop.f32.mrb[0].mxu0
  %v2618 = vadd.f32 %v2542, %v2617
  %v2619 = vpop.f32.mrb[0].mxu0
  %2620 = vdwg.mxu0
  %vm2621 = vcmask 31744
  %v2622 = vsel %vm2621, %v2618, -inf
  %2623 = vmax.xlane.f32.xlu0 %v2622
  %v2624 = vpop.xlane.xlu0 %2623
  %v2625 = vsub.f32 %v2618, %v2624
  %v2626 = vmul.f32 %v2625, 1.442695
  %v2627 = vpow.pop %v2626
  %v2628 = vsel %vm2621, %v2627, 0.0
  %2629 = vadd.xlane.f32.xlu0 %v2628
  %v2630 = vpop.xlane.xlu0 %2629
  %v2631 = vrcp.pop %v2630
  %v2632 = vmul.f32 %v2627, %v2631
  %2633 = vst.msk [vmem:[%s9] sm:$0xff] %vm2621, %v2632
  // Predicated region
  $region38: #{forward.1} parent=0 // pred_check
    _
  $region39: #{forward.1} parent=0 // pred_check_branch
    %2635 = sbr.rel (0) target = $region41
  $region40: #{forward.1} parent=0 // pred_region
    _
  $region41: #{forward.1} parent=0 // pred_fallthru
    _
  // Predicated region
  $region42: #{forward.1} parent=0 // pred_check
    _
  $region43: #{forward.1} parent=0 // pred_check_branch
    %2637 = sbr.rel (0) target = $region45
  $region44: #{forward.1} parent=0 // pred_region
    _
  $region45: #{forward.1} parent=0 // pred_fallthru
    _

</llo_original>
